<compile_context>
chip_gen: v5e
topology: v5e:2x2
jax: 0.10.0
libtpu: 0.0.40
codegen_flags: <defaults>
</compile_context>

<pallas_src>
import functools

import jax
import jax.numpy as jnp
from jax.experimental import pallas as pl
from jax.experimental.pallas import tpu as pltpu

BN_EPS = 1e-5

TARGET_BLOCK_BYTES = 1 << 20        # aim >= 1 MiB moved per grid step (HBM roofline)
MAX_BLOCK_BYTES = 2 << 20           # cap: 2x(in)+2x(out) double-buffering stays < 8 MiB
FUSED_MAX_BYTES = 2 << 20           # single-call path when the whole input is this small
VMEM_LIMIT_BYTES = 32 * 1024 * 1024  # explicit: > v5e's 16 MiB default, <= v7x's 64 MiB


# --------------------------------------------------------------------------- #
# Tile selection
# --------------------------------------------------------------------------- #
def _pick_rows(rt, c):
    """Rows (of 128 lanes) per spatial block: a multiple of 8 dividing rt, or rt."""
    row_bytes = c * 128 * 4
    if rt * row_bytes <= MAX_BLOCK_BYTES:
        return rt
    cap = max(8, (MAX_BLOCK_BYTES // row_bytes) // 8 * 8)
    r = cap
    while r >= 8:
        if rt % r == 0:
            return r
        r -= 8
    return rt  # no suitable divisor; whole row fallback (rare)


def _pick_samples(n, c, r):
    """Samples per block: a divisor of n, capped for unroll size / VMEM budget."""
    block_rows_bytes = c * r * 128 * 4
    nb = 1
    for d in range(1, min(n, 16) + 1):
        if n % d != 0:
            continue
        if d * block_rows_bytes > MAX_BLOCK_BYTES:
            break
        nb = d
        if d * block_rows_bytes >= TARGET_BLOCK_BYTES:
            break
    return nb


# --------------------------------------------------------------------------- #
# Kernel bodies
# --------------------------------------------------------------------------- #
def _mix_rows(x_rows, w_ref, co):
    """y_co = sum_ci w[co,ci] * x_ci as C dense-block FMAs on full (R,128) slabs."""
    acc = x_rows[0] * w_ref[co, 0]
    for ci in range(1, len(x_rows)):
        acc = acc + x_rows[ci] * w_ref[co, ci]
    return acc


def _stats_kernel(w_ref, x_ref, sum_ref, sumsq_ref):
    # w_ref:   (C, C) SMEM conv weight (y = W @ x per pixel; bias cancelled by BN).
    # x_ref:   (Nb, C, R, 128) VMEM input block.
    # sum_ref, sumsq_ref: (C, 128) lane-wide partial accumulators, resident across
    #   the spatial grid axis; one output block per N-block (megacore-friendly).
    @pl.when(pl.program_id(1) == 0)
    def _():
        sum_ref[...] = jnp.zeros_like(sum_ref)
        sumsq_ref[...] = jnp.zeros_like(sumsq_ref)

    nb, c = x_ref.shape[0], x_ref.shape[1]
    for n in range(nb):
        x_rows = [x_ref[n, ci] for ci in range(c)]               # (R, 128) each
        for co in range(c):
            y = _mix_rows(x_rows, w_ref, co)                     # (R, 128)
            # Sublane-only reduce: keep 128 lane-partials per channel (no XLU
            # cross-lane reduce per tile, better summation accuracy).
            sum_ref[co:co + 1, :] += jnp.sum(y, axis=0, keepdims=True)
            sumsq_ref[co:co + 1, :] += jnp.sum(y * y, axis=0, keepdims=True)


def _apply_kernel(w_ref, shift_ref, x_ref, o_ref):
    # w_ref:     (C, C) SMEM scale-folded conv weight.
    # shift_ref: (C,)   SMEM per-channel shift (beta - mean * scale).
    # x_ref, o_ref: (Nb, C, R, 128) VMEM blocks (lane-dense stores).
    nb, c = x_ref.shape[0], x_ref.shape[1]
    for n in range(nb):
        x_rows = [x_ref[n, ci] for ci in range(c)]
        for co in range(c):
            y = _mix_rows(x_rows, w_ref, co)
            o_ref[n, co] = jnp.tanh(y + shift_ref[co])           # direct per-channel store


def _make_fused_kernel(n, c, inv_p):
    """Single-call path: x, y, out all resident in VMEM (small problems only)."""
    def kernel(w_ref, gamma_ref, beta_ref, x_ref, o_ref, y_ref):
        # Stage 1: y = W @ x (per-pixel channel mix).
        for ni in range(n):
            x_rows = [x_ref[ni, ci] for ci in range(c)]
            for co in range(c):
                y_ref[ni, co] = _mix_rows(x_rows, w_ref, co)
        # Stage 2: BN (training-mode batch stats, centered variance) + tanh.
        for co in range(c):
            s = jnp.zeros((1, 1), jnp.float32)
            for ni in range(n):
                part = jnp.sum(y_ref[ni, co], axis=0, keepdims=True)    # (1, 128)
                s = s + jnp.sum(part, axis=1, keepdims=True)            # (1, 1)
            mean = s * inv_p
            q = jnp.zeros((1, 1), jnp.float32)
            for ni in range(n):
                d = y_ref[ni, co] - mean
                part = jnp.sum(d * d, axis=0, keepdims=True)
                q = q + jnp.sum(part, axis=1, keepdims=True)
            var = q * inv_p
            scale = gamma_ref[co] * jax.lax.rsqrt(var + BN_EPS)         # (1, 1)
            shift = beta_ref[co] - mean * scale                         # (1, 1)
            for ni in range(n):
                o_ref[ni, co] = jnp.tanh(y_ref[ni, co] * scale + shift)
    return kernel


# --------------------------------------------------------------------------- #
# Wrapper
# --------------------------------------------------------------------------- #
@functools.partial(jax.jit, static_argnames=("force_two_pass",))
def pde_function(z_nchw, conv_w, conv_b, bn_gamma, bn_beta, force_two_pass=False):
    """Forward of PDEFunction: Conv2d(1x1) -> BatchNorm2d(training stats) -> Tanh.

    z_nchw : (N, C, H, W) float; conv_w : (C, C, 1, 1); conv_b : (C,) (unused:
    cancelled exactly by the train-mode BN mean); bn_gamma, bn_beta : (C,).
    """
    n, c, h, w_sp = z_nchw.shape
    hw = h * w_sp
    p = n * hw                                   # true pixel count for BN stats

    w = conv_w[:, :, 0, 0].astype(jnp.float32)   # (C_out, C_in)
    gamma = bn_gamma.astype(jnp.float32)
    beta = bn_beta.astype(jnp.float32)
    del conv_b  # cancelled by batch-mean subtraction (train-mode BN only)

    # Lane-pad HW to a multiple of 128.  Padded pixels give y = W @ 0 = 0, which
    # contributes nothing to sum / sum-of-squares, so dividing by the true p
    # keeps the statistics exact; padded outputs are sliced off at the end.
    hwp = -(-hw // 128) * 128
    row_bytes = c * 128 * 4
    if (hwp // 128) * row_bytes > MAX_BLOCK_BYTES and (hwp // 128) % 8 != 0:
        hwp = -(-hw // 1024) * 1024              # make the row count a multiple of 8
    pad = hwp - hw
    rt = hwp // 128

    x = z_nchw.reshape(n, c, hw).astype(jnp.float32)
    if pad:
        x = jnp.pad(x, ((0, 0), (0, 0), (0, pad)))
    x4 = x.reshape(n, c, rt, 128)                # free reshape: lanes=128, rows on sublanes

    smem_spec = pl.BlockSpec(memory_space=pltpu.MemorySpace.SMEM)

    fits_fused = (pad == 0 and n * c * hwp * 4 <= FUSED_MAX_BYTES and n * c <= 64)
    if fits_fused and not force_two_pass:
        # ---- Single fused call: one HBM read + one HBM write. ----
        out4 = pl.pallas_call(
            _make_fused_kernel(n, c, 1.0 / p),
            out_shape=jax.ShapeDtypeStruct((n, c, rt, 128), jnp.float32),
            in_specs=[smem_spec, smem_spec, smem_spec,
                      pl.BlockSpec(memory_space=pltpu.MemorySpace.VMEM)],
            out_specs=pl.BlockSpec(memory_space=pltpu.MemorySpace.VMEM),
            scratch_shapes=[pltpu.VMEM((n, c, rt, 128), jnp.float32)],
        )(w, gamma, beta, x4)
        return out4.reshape(n, c, hwp)[..., :hw].reshape(n, c, h, w_sp)

    # ---- General path: two HBM passes with large (~1-2 MiB) pipelined blocks. ----
    r = _pick_rows(rt, c)
    nb = _pick_samples(n, c, r)
    ng, ns = n // nb, rt // r

    x_spec = pl.BlockSpec((nb, c, r, 128), lambda i, s: (i, 0, s, 0))
    acc_spec = pl.BlockSpec((None, c, 128), lambda i, s: (i, 0, 0))

    # Pass 1: per-(N-block, channel, lane) partial sum / sumsq of y = W @ x.
    psum, psumsq = pl.pallas_call(
        _stats_kernel,
        out_shape=(jax.ShapeDtypeStruct((ng, c, 128), jnp.float32),
                   jax.ShapeDtypeStruct((ng, c, 128), jnp.float32)),
        grid=(ng, ns),
        in_specs=[smem_spec, x_spec],
        out_specs=(acc_spec, acc_spec),
        compiler_params=pltpu.CompilerParams(
            dimension_semantics=("parallel", "arbitrary"),
            vmem_limit_bytes=VMEM_LIMIT_BYTES),
    )(w, x4)

    # Tiny (C,)-sized math: fold BN into a per-channel scale / shift.
    sum_y = jnp.sum(psum, axis=(0, 2))
    sumsq_y = jnp.sum(psumsq, axis=(0, 2))
    mean = sum_y / p
    var = jnp.maximum(sumsq_y / p - mean * mean, 0.0)    # biased var (BN train mode)
    scale = gamma * jax.lax.rsqrt(var + BN_EPS)
    shift = beta - mean * scale
    w_scaled = scale[:, None] * w                        # fold scale into conv weight

    # Pass 2: out = tanh(w_scaled @ x + shift); both grid axes parallel.
    out4 = pl.pallas_call(
        _apply_kernel,
        out_shape=jax.ShapeDtypeStruct((n, c, rt, 128), jnp.float32),
        grid=(ng, ns),
        in_specs=[smem_spec, smem_spec, x_spec],
        out_specs=x_spec,
        compiler_params=pltpu.CompilerParams(
            dimension_semantics=("parallel", "parallel"),
            vmem_limit_bytes=VMEM_LIMIT_BYTES),
    )(w_scaled, shift, x4)

    return out4.reshape(n, c, hwp)[..., :hw].reshape(n, c, h, w_sp)


def reference_forward(z_nchw, conv_w, conv_b, bn_gamma, bn_beta):
    """Pure-JAX reference mirroring the PyTorch module (training-mode BN)."""
    y = jnp.einsum("nchw,oc->nohw", z_nchw, conv_w[:, :, 0, 0]) \
        + conv_b[None, :, None, None]
    mean = jnp.mean(y, axis=(0, 2, 3), keepdims=True)
    var = jnp.mean((y - mean) ** 2, axis=(0, 2, 3), keepdims=True)
    y_hat = (y - mean) / jnp.sqrt(var + BN_EPS)
    y_aff = y_hat * bn_gamma[None, :, None, None] + bn_beta[None, :, None, None]
    return jnp.tanh(y_aff)


if __name__ == "__main__":
    key = jax.random.PRNGKey(0)
    k_x, k_w, k_b = jax.random.split(key, 3)

    N, C, H, W = 2, 4, 16, 16  # z_dim = 4

    z = jax.random.normal(k_x, (N, C, H, W), dtype=jnp.float32)

    # Deterministic synthetic parameters (PyTorch shapes / default BN affine init).
    bound = 1.0 / (C ** 0.5)
    conv_w = jax.random.uniform(k_w, (C, C, 1, 1), jnp.float32, -bound, bound)
    conv_b = jax.random.uniform(k_b, (C,), jnp.float32, -bound, bound)
    bn_gamma = jnp.ones((C,), jnp.float32)
    bn_beta = jnp.zeros((C,), jnp.float32)

    ref = reference_forward(z, conv_w, conv_b, bn_gamma, bn_beta)

    # Fused single-call path (taken for this small shape).
    out = jax.block_until_ready(pde_function(z, conv_w, conv_b, bn_gamma, bn_beta))
    assert out.shape == (N, C, H, W)
    assert jnp.allclose(out, ref, atol=1e-5, rtol=1e-5), "fused path mismatch"

    # Two-pass pipelined path (what large shapes take) — validated too.
    out2 = jax.block_until_ready(
        pde_function(z, conv_w, conv_b, bn_gamma, bn_beta, force_two_pass=True))
    assert jnp.allclose(out2, ref, atol=1e-5, rtol=1e-5), "two-pass path mismatch"

    print("KERNEL_OK")
</pallas_src>

<mosaic_0001>
module attributes {stable_mosaic.version = 11 : i64} {
  func.func @kernel(%arg0: memref<4x4xf32, #tpu.memory_space<smem>>, %arg1: memref<4xf32, #tpu.memory_space<smem>>, %arg2: memref<4xf32, #tpu.memory_space<smem>>, %arg3: memref<2x4x2x128xf32, #tpu.memory_space<vmem>>, %arg4: memref<2x4x2x128xf32, #tpu.memory_space<vmem>>, %arg5: memref<2x4x2x128xf32, #tpu.memory_space<vmem>>) attributes {dimension_semantics = [], scalar_prefetch = 0 : i64, scratch_operands = 1 : i64, tpu.core_type = #tpu.core_type<tc>} {
    %c0 = arith.constant 0 : index
    %c0_0 = arith.constant 0 : index
    %c0_1 = arith.constant 0 : index
    %c0_2 = arith.constant 0 : index
    %0 = vector.load %arg3[%c0, %c0_0, %c0_1, %c0_2] : memref<2x4x2x128xf32, #tpu.memory_space<vmem>>, vector<1x1x2x128xf32>
    %1 = vector.shape_cast %0 : vector<1x1x2x128xf32> to vector<2x128xf32>
    %c0_3 = arith.constant 0 : index
    %c1 = arith.constant 1 : index
    %c0_4 = arith.constant 0 : index
    %c0_5 = arith.constant 0 : index
    %2 = vector.load %arg3[%c0_3, %c1, %c0_4, %c0_5] : memref<2x4x2x128xf32, #tpu.memory_space<vmem>>, vector<1x1x2x128xf32>
    %3 = vector.shape_cast %2 : vector<1x1x2x128xf32> to vector<2x128xf32>
    %c0_6 = arith.constant 0 : index
    %c2 = arith.constant 2 : index
    %c0_7 = arith.constant 0 : index
    %c0_8 = arith.constant 0 : index
    %4 = vector.load %arg3[%c0_6, %c2, %c0_7, %c0_8] : memref<2x4x2x128xf32, #tpu.memory_space<vmem>>, vector<1x1x2x128xf32>
    %5 = vector.shape_cast %4 : vector<1x1x2x128xf32> to vector<2x128xf32>
    %c0_9 = arith.constant 0 : index
    %c3 = arith.constant 3 : index
    %c0_10 = arith.constant 0 : index
    %c0_11 = arith.constant 0 : index
    %6 = vector.load %arg3[%c0_9, %c3, %c0_10, %c0_11] : memref<2x4x2x128xf32, #tpu.memory_space<vmem>>, vector<1x1x2x128xf32>
    %7 = vector.shape_cast %6 : vector<1x1x2x128xf32> to vector<2x128xf32>
    %c0_12 = arith.constant 0 : index
    %c0_13 = arith.constant 0 : index
    %8 = memref.load %arg0[%c0_12, %c0_13] : memref<4x4xf32, #tpu.memory_space<smem>>
    %9 = vector.broadcast %8 : f32 to vector<2x128xf32>
    %10 = arith.mulf %1, %9 : vector<2x128xf32>
    %c0_14 = arith.constant 0 : index
    %c1_15 = arith.constant 1 : index
    %11 = memref.load %arg0[%c0_14, %c1_15] : memref<4x4xf32, #tpu.memory_space<smem>>
    %12 = vector.broadcast %11 : f32 to vector<2x128xf32>
    %13 = arith.mulf %3, %12 : vector<2x128xf32>
    %14 = arith.addf %10, %13 : vector<2x128xf32>
    %c0_16 = arith.constant 0 : index
    %c2_17 = arith.constant 2 : index
    %15 = memref.load %arg0[%c0_16, %c2_17] : memref<4x4xf32, #tpu.memory_space<smem>>
    %16 = vector.broadcast %15 : f32 to vector<2x128xf32>
    %17 = arith.mulf %5, %16 : vector<2x128xf32>
    %18 = arith.addf %14, %17 : vector<2x128xf32>
    %c0_18 = arith.constant 0 : index
    %c3_19 = arith.constant 3 : index
    %19 = memref.load %arg0[%c0_18, %c3_19] : memref<4x4xf32, #tpu.memory_space<smem>>
    %20 = vector.broadcast %19 : f32 to vector<2x128xf32>
    %21 = arith.mulf %7, %20 : vector<2x128xf32>
    %22 = arith.addf %18, %21 : vector<2x128xf32>
    %c0_20 = arith.constant 0 : index
    %c0_21 = arith.constant 0 : index
    %c0_22 = arith.constant 0 : index
    %c0_23 = arith.constant 0 : index
    %23 = vector.load %arg5[%c0_20, %c0_21, %c0_22, %c0_23] : memref<2x4x2x128xf32, #tpu.memory_space<vmem>>, vector<1x1x2x128xf32>
    %24 = vector.shape_cast %23 : vector<1x1x2x128xf32> to vector<2x128xf32>
    %25 = vector.shape_cast %22 : vector<2x128xf32> to vector<1x1x2x128xf32>
    tpu.vector_store %arg5[%c0_20, %c0_21, %c0_22, %c0_23], %25 {strides = array<i32>} : memref<2x4x2x128xf32, #tpu.memory_space<vmem>>, vector<1x1x2x128xf32>,
    %c1_24 = arith.constant 1 : index
    %c0_25 = arith.constant 0 : index
    %26 = memref.load %arg0[%c1_24, %c0_25] : memref<4x4xf32, #tpu.memory_space<smem>>
    %27 = vector.broadcast %26 : f32 to vector<2x128xf32>
    %28 = arith.mulf %1, %27 : vector<2x128xf32>
    %c1_26 = arith.constant 1 : index
    %c1_27 = arith.constant 1 : index
    %29 = memref.load %arg0[%c1_26, %c1_27] : memref<4x4xf32, #tpu.memory_space<smem>>
    %30 = vector.broadcast %29 : f32 to vector<2x128xf32>
    %31 = arith.mulf %3, %30 : vector<2x128xf32>
    %32 = arith.addf %28, %31 : vector<2x128xf32>
    %c1_28 = arith.constant 1 : index
    %c2_29 = arith.constant 2 : index
    %33 = memref.load %arg0[%c1_28, %c2_29] : memref<4x4xf32, #tpu.memory_space<smem>>
    %34 = vector.broadcast %33 : f32 to vector<2x128xf32>
    %35 = arith.mulf %5, %34 : vector<2x128xf32>
    %36 = arith.addf %32, %35 : vector<2x128xf32>
    %c1_30 = arith.constant 1 : index
    %c3_31 = arith.constant 3 : index
    %37 = memref.load %arg0[%c1_30, %c3_31] : memref<4x4xf32, #tpu.memory_space<smem>>
    %38 = vector.broadcast %37 : f32 to vector<2x128xf32>
    %39 = arith.mulf %7, %38 : vector<2x128xf32>
    %40 = arith.addf %36, %39 : vector<2x128xf32>
    %c0_32 = arith.constant 0 : index
    %c1_33 = arith.constant 1 : index
    %c0_34 = arith.constant 0 : index
    %c0_35 = arith.constant 0 : index
    %41 = vector.load %arg5[%c0_32, %c1_33, %c0_34, %c0_35] : memref<2x4x2x128xf32, #tpu.memory_space<vmem>>, vector<1x1x2x128xf32>
    %42 = vector.shape_cast %41 : vector<1x1x2x128xf32> to vector<2x128xf32>
    %43 = vector.shape_cast %40 : vector<2x128xf32> to vector<1x1x2x128xf32>
    tpu.vector_store %arg5[%c0_32, %c1_33, %c0_34, %c0_35], %43 {strides = array<i32>} : memref<2x4x2x128xf32, #tpu.memory_space<vmem>>, vector<1x1x2x128xf32>,
    %c2_36 = arith.constant 2 : index
    %c0_37 = arith.constant 0 : index
    %44 = memref.load %arg0[%c2_36, %c0_37] : memref<4x4xf32, #tpu.memory_space<smem>>
    %45 = vector.broadcast %44 : f32 to vector<2x128xf32>
    %46 = arith.mulf %1, %45 : vector<2x128xf32>
    %c2_38 = arith.constant 2 : index
    %c1_39 = arith.constant 1 : index
    %47 = memref.load %arg0[%c2_38, %c1_39] : memref<4x4xf32, #tpu.memory_space<smem>>
    %48 = vector.broadcast %47 : f32 to vector<2x128xf32>
    %49 = arith.mulf %3, %48 : vector<2x128xf32>
    %50 = arith.addf %46, %49 : vector<2x128xf32>
    %c2_40 = arith.constant 2 : index
    %c2_41 = arith.constant 2 : index
    %51 = memref.load %arg0[%c2_40, %c2_41] : memref<4x4xf32, #tpu.memory_space<smem>>
    %52 = vector.broadcast %51 : f32 to vector<2x128xf32>
    %53 = arith.mulf %5, %52 : vector<2x128xf32>
    %54 = arith.addf %50, %53 : vector<2x128xf32>
    %c2_42 = arith.constant 2 : index
    %c3_43 = arith.constant 3 : index
    %55 = memref.load %arg0[%c2_42, %c3_43] : memref<4x4xf32, #tpu.memory_space<smem>>
    %56 = vector.broadcast %55 : f32 to vector<2x128xf32>
    %57 = arith.mulf %7, %56 : vector<2x128xf32>
    %58 = arith.addf %54, %57 : vector<2x128xf32>
    %c0_44 = arith.constant 0 : index
    %c2_45 = arith.constant 2 : index
    %c0_46 = arith.constant 0 : index
    %c0_47 = arith.constant 0 : index
    %59 = vector.load %arg5[%c0_44, %c2_45, %c0_46, %c0_47] : memref<2x4x2x128xf32, #tpu.memory_space<vmem>>, vector<1x1x2x128xf32>
    %60 = vector.shape_cast %59 : vector<1x1x2x128xf32> to vector<2x128xf32>
    %61 = vector.shape_cast %58 : vector<2x128xf32> to vector<1x1x2x128xf32>
    tpu.vector_store %arg5[%c0_44, %c2_45, %c0_46, %c0_47], %61 {strides = array<i32>} : memref<2x4x2x128xf32, #tpu.memory_space<vmem>>, vector<1x1x2x128xf32>,
    %c3_48 = arith.constant 3 : index
    %c0_49 = arith.constant 0 : index
    %62 = memref.load %arg0[%c3_48, %c0_49] : memref<4x4xf32, #tpu.memory_space<smem>>
    %63 = vector.broadcast %62 : f32 to vector<2x128xf32>
    %64 = arith.mulf %1, %63 : vector<2x128xf32>
    %c3_50 = arith.constant 3 : index
    %c1_51 = arith.constant 1 : index
    %65 = memref.load %arg0[%c3_50, %c1_51] : memref<4x4xf32, #tpu.memory_space<smem>>
    %66 = vector.broadcast %65 : f32 to vector<2x128xf32>
    %67 = arith.mulf %3, %66 : vector<2x128xf32>
    %68 = arith.addf %64, %67 : vector<2x128xf32>
    %c3_52 = arith.constant 3 : index
    %c2_53 = arith.constant 2 : index
    %69 = memref.load %arg0[%c3_52, %c2_53] : memref<4x4xf32, #tpu.memory_space<smem>>
    %70 = vector.broadcast %69 : f32 to vector<2x128xf32>
    %71 = arith.mulf %5, %70 : vector<2x128xf32>
    %72 = arith.addf %68, %71 : vector<2x128xf32>
    %c3_54 = arith.constant 3 : index
    %c3_55 = arith.constant 3 : index
    %73 = memref.load %arg0[%c3_54, %c3_55] : memref<4x4xf32, #tpu.memory_space<smem>>
    %74 = vector.broadcast %73 : f32 to vector<2x128xf32>
    %75 = arith.mulf %7, %74 : vector<2x128xf32>
    %76 = arith.addf %72, %75 : vector<2x128xf32>
    %c0_56 = arith.constant 0 : index
    %c3_57 = arith.constant 3 : index
    %c0_58 = arith.constant 0 : index
    %c0_59 = arith.constant 0 : index
    %77 = vector.load %arg5[%c0_56, %c3_57, %c0_58, %c0_59] : memref<2x4x2x128xf32, #tpu.memory_space<vmem>>, vector<1x1x2x128xf32>
    %78 = vector.shape_cast %77 : vector<1x1x2x128xf32> to vector<2x128xf32>
    %79 = vector.shape_cast %76 : vector<2x128xf32> to vector<1x1x2x128xf32>
    tpu.vector_store %arg5[%c0_56, %c3_57, %c0_58, %c0_59], %79 {strides = array<i32>} : memref<2x4x2x128xf32, #tpu.memory_space<vmem>>, vector<1x1x2x128xf32>,
    %c1_60 = arith.constant 1 : index
    %c0_61 = arith.constant 0 : index
    %c0_62 = arith.constant 0 : index
    %c0_63 = arith.constant 0 : index
    %80 = vector.load %arg3[%c1_60, %c0_61, %c0_62, %c0_63] : memref<2x4x2x128xf32, #tpu.memory_space<vmem>>, vector<1x1x2x128xf32>
    %81 = vector.shape_cast %80 : vector<1x1x2x128xf32> to vector<2x128xf32>
    %c1_64 = arith.constant 1 : index
    %c1_65 = arith.constant 1 : index
    %c0_66 = arith.constant 0 : index
    %c0_67 = arith.constant 0 : index
    %82 = vector.load %arg3[%c1_64, %c1_65, %c0_66, %c0_67] : memref<2x4x2x128xf32, #tpu.memory_space<vmem>>, vector<1x1x2x128xf32>
    %83 = vector.shape_cast %82 : vector<1x1x2x128xf32> to vector<2x128xf32>
    %c1_68 = arith.constant 1 : index
    %c2_69 = arith.constant 2 : index
    %c0_70 = arith.constant 0 : index
    %c0_71 = arith.constant 0 : index
    %84 = vector.load %arg3[%c1_68, %c2_69, %c0_70, %c0_71] : memref<2x4x2x128xf32, #tpu.memory_space<vmem>>, vector<1x1x2x128xf32>
    %85 = vector.shape_cast %84 : vector<1x1x2x128xf32> to vector<2x128xf32>
    %c1_72 = arith.constant 1 : index
    %c3_73 = arith.constant 3 : index
    %c0_74 = arith.constant 0 : index
    %c0_75 = arith.constant 0 : index
    %86 = vector.load %arg3[%c1_72, %c3_73, %c0_74, %c0_75] : memref<2x4x2x128xf32, #tpu.memory_space<vmem>>, vector<1x1x2x128xf32>
    %87 = vector.shape_cast %86 : vector<1x1x2x128xf32> to vector<2x128xf32>
    %c0_76 = arith.constant 0 : index
    %c0_77 = arith.constant 0 : index
    %88 = memref.load %arg0[%c0_76, %c0_77] : memref<4x4xf32, #tpu.memory_space<smem>>
    %89 = vector.broadcast %88 : f32 to vector<2x128xf32>
    %90 = arith.mulf %81, %89 : vector<2x128xf32>
    %c0_78 = arith.constant 0 : index
    %c1_79 = arith.constant 1 : index
    %91 = memref.load %arg0[%c0_78, %c1_79] : memref<4x4xf32, #tpu.memory_space<smem>>
    %92 = vector.broadcast %91 : f32 to vector<2x128xf32>
    %93 = arith.mulf %83, %92 : vector<2x128xf32>
    %94 = arith.addf %90, %93 : vector<2x128xf32>
    %c0_80 = arith.constant 0 : index
    %c2_81 = arith.constant 2 : index
    %95 = memref.load %arg0[%c0_80, %c2_81] : memref<4x4xf32, #tpu.memory_space<smem>>
    %96 = vector.broadcast %95 : f32 to vector<2x128xf32>
    %97 = arith.mulf %85, %96 : vector<2x128xf32>
    %98 = arith.addf %94, %97 : vector<2x128xf32>
    %c0_82 = arith.constant 0 : index
    %c3_83 = arith.constant 3 : index
    %99 = memref.load %arg0[%c0_82, %c3_83] : memref<4x4xf32, #tpu.memory_space<smem>>
    %100 = vector.broadcast %99 : f32 to vector<2x128xf32>
    %101 = arith.mulf %87, %100 : vector<2x128xf32>
    %102 = arith.addf %98, %101 : vector<2x128xf32>
    %c1_84 = arith.constant 1 : index
    %c0_85 = arith.constant 0 : index
    %c0_86 = arith.constant 0 : index
    %c0_87 = arith.constant 0 : index
    %103 = vector.load %arg5[%c1_84, %c0_85, %c0_86, %c0_87] : memref<2x4x2x128xf32, #tpu.memory_space<vmem>>, vector<1x1x2x128xf32>
    %104 = vector.shape_cast %103 : vector<1x1x2x128xf32> to vector<2x128xf32>
    %105 = vector.shape_cast %102 : vector<2x128xf32> to vector<1x1x2x128xf32>
    tpu.vector_store %arg5[%c1_84, %c0_85, %c0_86, %c0_87], %105 {strides = array<i32>} : memref<2x4x2x128xf32, #tpu.memory_space<vmem>>, vector<1x1x2x128xf32>,
    %c1_88 = arith.constant 1 : index
    %c0_89 = arith.constant 0 : index
    %106 = memref.load %arg0[%c1_88, %c0_89] : memref<4x4xf32, #tpu.memory_space<smem>>
    %107 = vector.broadcast %106 : f32 to vector<2x128xf32>
    %108 = arith.mulf %81, %107 : vector<2x128xf32>
    %c1_90 = arith.constant 1 : index
    %c1_91 = arith.constant 1 : index
    %109 = memref.load %arg0[%c1_90, %c1_91] : memref<4x4xf32, #tpu.memory_space<smem>>
    %110 = vector.broadcast %109 : f32 to vector<2x128xf32>
    %111 = arith.mulf %83, %110 : vector<2x128xf32>
    %112 = arith.addf %108, %111 : vector<2x128xf32>
    %c1_92 = arith.constant 1 : index
    %c2_93 = arith.constant 2 : index
    %113 = memref.load %arg0[%c1_92, %c2_93] : memref<4x4xf32, #tpu.memory_space<smem>>
    %114 = vector.broadcast %113 : f32 to vector<2x128xf32>
    %115 = arith.mulf %85, %114 : vector<2x128xf32>
    %116 = arith.addf %112, %115 : vector<2x128xf32>
    %c1_94 = arith.constant 1 : index
    %c3_95 = arith.constant 3 : index
    %117 = memref.load %arg0[%c1_94, %c3_95] : memref<4x4xf32, #tpu.memory_space<smem>>
    %118 = vector.broadcast %117 : f32 to vector<2x128xf32>
    %119 = arith.mulf %87, %118 : vector<2x128xf32>
    %120 = arith.addf %116, %119 : vector<2x128xf32>
    %c1_96 = arith.constant 1 : index
    %c1_97 = arith.constant 1 : index
    %c0_98 = arith.constant 0 : index
    %c0_99 = arith.constant 0 : index
    %121 = vector.load %arg5[%c1_96, %c1_97, %c0_98, %c0_99] : memref<2x4x2x128xf32, #tpu.memory_space<vmem>>, vector<1x1x2x128xf32>
    %122 = vector.shape_cast %121 : vector<1x1x2x128xf32> to vector<2x128xf32>
    %123 = vector.shape_cast %120 : vector<2x128xf32> to vector<1x1x2x128xf32>
    tpu.vector_store %arg5[%c1_96, %c1_97, %c0_98, %c0_99], %123 {strides = array<i32>} : memref<2x4x2x128xf32, #tpu.memory_space<vmem>>, vector<1x1x2x128xf32>,
    %c2_100 = arith.constant 2 : index
    %c0_101 = arith.constant 0 : index
    %124 = memref.load %arg0[%c2_100, %c0_101] : memref<4x4xf32, #tpu.memory_space<smem>>
    %125 = vector.broadcast %124 : f32 to vector<2x128xf32>
    %126 = arith.mulf %81, %125 : vector<2x128xf32>
    %c2_102 = arith.constant 2 : index
    %c1_103 = arith.constant 1 : index
    %127 = memref.load %arg0[%c2_102, %c1_103] : memref<4x4xf32, #tpu.memory_space<smem>>
    %128 = vector.broadcast %127 : f32 to vector<2x128xf32>
    %129 = arith.mulf %83, %128 : vector<2x128xf32>
    %130 = arith.addf %126, %129 : vector<2x128xf32>
    %c2_104 = arith.constant 2 : index
    %c2_105 = arith.constant 2 : index
    %131 = memref.load %arg0[%c2_104, %c2_105] : memref<4x4xf32, #tpu.memory_space<smem>>
    %132 = vector.broadcast %131 : f32 to vector<2x128xf32>
    %133 = arith.mulf %85, %132 : vector<2x128xf32>
    %134 = arith.addf %130, %133 : vector<2x128xf32>
    %c2_106 = arith.constant 2 : index
    %c3_107 = arith.constant 3 : index
    %135 = memref.load %arg0[%c2_106, %c3_107] : memref<4x4xf32, #tpu.memory_space<smem>>
    %136 = vector.broadcast %135 : f32 to vector<2x128xf32>
    %137 = arith.mulf %87, %136 : vector<2x128xf32>
    %138 = arith.addf %134, %137 : vector<2x128xf32>
    %c1_108 = arith.constant 1 : index
    %c2_109 = arith.constant 2 : index
    %c0_110 = arith.constant 0 : index
    %c0_111 = arith.constant 0 : index
    %139 = vector.load %arg5[%c1_108, %c2_109, %c0_110, %c0_111] : memref<2x4x2x128xf32, #tpu.memory_space<vmem>>, vector<1x1x2x128xf32>
    %140 = vector.shape_cast %139 : vector<1x1x2x128xf32> to vector<2x128xf32>
    %141 = vector.shape_cast %138 : vector<2x128xf32> to vector<1x1x2x128xf32>
    tpu.vector_store %arg5[%c1_108, %c2_109, %c0_110, %c0_111], %141 {strides = array<i32>} : memref<2x4x2x128xf32, #tpu.memory_space<vmem>>, vector<1x1x2x128xf32>,
    %c3_112 = arith.constant 3 : index
    %c0_113 = arith.constant 0 : index
    %142 = memref.load %arg0[%c3_112, %c0_113] : memref<4x4xf32, #tpu.memory_space<smem>>
    %143 = vector.broadcast %142 : f32 to vector<2x128xf32>
    %144 = arith.mulf %81, %143 : vector<2x128xf32>
    %c3_114 = arith.constant 3 : index
    %c1_115 = arith.constant 1 : index
    %145 = memref.load %arg0[%c3_114, %c1_115] : memref<4x4xf32, #tpu.memory_space<smem>>
    %146 = vector.broadcast %145 : f32 to vector<2x128xf32>
    %147 = arith.mulf %83, %146 : vector<2x128xf32>
    %148 = arith.addf %144, %147 : vector<2x128xf32>
    %c3_116 = arith.constant 3 : index
    %c2_117 = arith.constant 2 : index
    %149 = memref.load %arg0[%c3_116, %c2_117] : memref<4x4xf32, #tpu.memory_space<smem>>
    %150 = vector.broadcast %149 : f32 to vector<2x128xf32>
    %151 = arith.mulf %85, %150 : vector<2x128xf32>
    %152 = arith.addf %148, %151 : vector<2x128xf32>
    %c3_118 = arith.constant 3 : index
    %c3_119 = arith.constant 3 : index
    %153 = memref.load %arg0[%c3_118, %c3_119] : memref<4x4xf32, #tpu.memory_space<smem>>
    %154 = vector.broadcast %153 : f32 to vector<2x128xf32>
    %155 = arith.mulf %87, %154 : vector<2x128xf32>
    %156 = arith.addf %152, %155 : vector<2x128xf32>
    %c1_120 = arith.constant 1 : index
    %c3_121 = arith.constant 3 : index
    %c0_122 = arith.constant 0 : index
    %c0_123 = arith.constant 0 : index
    %157 = vector.load %arg5[%c1_120, %c3_121, %c0_122, %c0_123] : memref<2x4x2x128xf32, #tpu.memory_space<vmem>>, vector<1x1x2x128xf32>
    %158 = vector.shape_cast %157 : vector<1x1x2x128xf32> to vector<2x128xf32>
    %159 = vector.shape_cast %156 : vector<2x128xf32> to vector<1x1x2x128xf32>
    tpu.vector_store %arg5[%c1_120, %c3_121, %c0_122, %c0_123], %159 {strides = array<i32>} : memref<2x4x2x128xf32, #tpu.memory_space<vmem>>, vector<1x1x2x128xf32>,
    %cst = arith.constant 0.000000e+00 : f32
    %160 = vector.broadcast %cst : f32 to vector<1x1xf32>
    %c0_124 = arith.constant 0 : index
    %c0_125 = arith.constant 0 : index
    %c0_126 = arith.constant 0 : index
    %c0_127 = arith.constant 0 : index
    %161 = vector.load %arg5[%c0_124, %c0_125, %c0_126, %c0_127] : memref<2x4x2x128xf32, #tpu.memory_space<vmem>>, vector<1x1x2x128xf32>
    %162 = vector.shape_cast %161 : vector<1x1x2x128xf32> to vector<2x128xf32>
    %cst_128 = arith.constant dense<0.000000e+00> : vector<128xf32>
    %163 = vector.multi_reduction <add>, %162, %cst_128 [0] : vector<2x128xf32> to vector<128xf32>
    %164 = vector.shape_cast %163 : vector<128xf32> to vector<1x128xf32>
    %cst_129 = arith.constant dense<0.000000e+00> : vector<1xf32>
    %165 = vector.multi_reduction <add>, %164, %cst_129 [1] : vector<1x128xf32> to vector<1xf32>
    %166 = vector.shape_cast %165 : vector<1xf32> to vector<1x1xf32>
    %167 = arith.addf %160, %166 : vector<1x1xf32>
    %c1_130 = arith.constant 1 : index
    %c0_131 = arith.constant 0 : index
    %c0_132 = arith.constant 0 : index
    %c0_133 = arith.constant 0 : index
    %168 = vector.load %arg5[%c1_130, %c0_131, %c0_132, %c0_133] : memref<2x4x2x128xf32, #tpu.memory_space<vmem>>, vector<1x1x2x128xf32>
    %169 = vector.shape_cast %168 : vector<1x1x2x128xf32> to vector<2x128xf32>
    %cst_134 = arith.constant dense<0.000000e+00> : vector<128xf32>
    %170 = vector.multi_reduction <add>, %169, %cst_134 [0] : vector<2x128xf32> to vector<128xf32>
    %171 = vector.shape_cast %170 : vector<128xf32> to vector<1x128xf32>
    %cst_135 = arith.constant dense<0.000000e+00> : vector<1xf32>
    %172 = vector.multi_reduction <add>, %171, %cst_135 [1] : vector<1x128xf32> to vector<1xf32>
    %173 = vector.shape_cast %172 : vector<1xf32> to vector<1x1xf32>
    %174 = arith.addf %167, %173 : vector<1x1xf32>
    %cst_136 = arith.constant 0.001953125 : f32
    %175 = vector.broadcast %cst_136 : f32 to vector<1x1xf32>
    %176 = arith.mulf %174, %175 : vector<1x1xf32>
    %cst_137 = arith.constant 0.000000e+00 : f32
    %177 = vector.broadcast %cst_137 : f32 to vector<1x1xf32>
    %c0_138 = arith.constant 0 : index
    %c0_139 = arith.constant 0 : index
    %c0_140 = arith.constant 0 : index
    %c0_141 = arith.constant 0 : index
    %178 = vector.load %arg5[%c0_138, %c0_139, %c0_140, %c0_141] : memref<2x4x2x128xf32, #tpu.memory_space<vmem>>, vector<1x1x2x128xf32>
    %179 = vector.shape_cast %178 : vector<1x1x2x128xf32> to vector<2x128xf32>
    %180 = vector.broadcast %176 : vector<1x1xf32> to vector<2x128xf32>
    %181 = arith.subf %179, %180 : vector<2x128xf32>
    %182 = arith.mulf %181, %181 : vector<2x128xf32>
    %cst_142 = arith.constant dense<0.000000e+00> : vector<128xf32>
    %183 = vector.multi_reduction <add>, %182, %cst_142 [0] : vector<2x128xf32> to vector<128xf32>
    %184 = vector.shape_cast %183 : vector<128xf32> to vector<1x128xf32>
    %cst_143 = arith.constant dense<0.000000e+00> : vector<1xf32>
    %185 = vector.multi_reduction <add>, %184, %cst_143 [1] : vector<1x128xf32> to vector<1xf32>
    %186 = vector.shape_cast %185 : vector<1xf32> to vector<1x1xf32>
    %187 = arith.addf %177, %186 : vector<1x1xf32>
    %c1_144 = arith.constant 1 : index
    %c0_145 = arith.constant 0 : index
    %c0_146 = arith.constant 0 : index
    %c0_147 = arith.constant 0 : index
    %188 = vector.load %arg5[%c1_144, %c0_145, %c0_146, %c0_147] : memref<2x4x2x128xf32, #tpu.memory_space<vmem>>, vector<1x1x2x128xf32>
    %189 = vector.shape_cast %188 : vector<1x1x2x128xf32> to vector<2x128xf32>
    %190 = vector.broadcast %176 : vector<1x1xf32> to vector<2x128xf32>
    %191 = arith.subf %189, %190 : vector<2x128xf32>
    %192 = arith.mulf %191, %191 : vector<2x128xf32>
    %cst_148 = arith.constant dense<0.000000e+00> : vector<128xf32>
    %193 = vector.multi_reduction <add>, %192, %cst_148 [0] : vector<2x128xf32> to vector<128xf32>
    %194 = vector.shape_cast %193 : vector<128xf32> to vector<1x128xf32>
    %cst_149 = arith.constant dense<0.000000e+00> : vector<1xf32>
    %195 = vector.multi_reduction <add>, %194, %cst_149 [1] : vector<1x128xf32> to vector<1xf32>
    %196 = vector.shape_cast %195 : vector<1xf32> to vector<1x1xf32>
    %197 = arith.addf %187, %196 : vector<1x1xf32>
    %cst_150 = arith.constant 0.001953125 : f32
    %198 = vector.broadcast %cst_150 : f32 to vector<1x1xf32>
    %199 = arith.mulf %197, %198 : vector<1x1xf32>
    %c0_151 = arith.constant 0 : index
    %200 = memref.load %arg1[%c0_151] : memref<4xf32, #tpu.memory_space<smem>>
    %cst_152 = arith.constant 9.99999974E-6 : f32
    %201 = vector.broadcast %cst_152 : f32 to vector<1x1xf32>
    %202 = arith.addf %199, %201 : vector<1x1xf32>
    %203 = math.rsqrt %202 : vector<1x1xf32>
    %204 = vector.broadcast %200 : f32 to vector<1x1xf32>
    %205 = arith.mulf %204, %203 : vector<1x1xf32>
    %c0_153 = arith.constant 0 : index
    %206 = memref.load %arg2[%c0_153] : memref<4xf32, #tpu.memory_space<smem>>
    %207 = arith.mulf %176, %205 : vector<1x1xf32>
    %208 = vector.broadcast %206 : f32 to vector<1x1xf32>
    %209 = arith.subf %208, %207 : vector<1x1xf32>
    %c0_154 = arith.constant 0 : index
    %c0_155 = arith.constant 0 : index
    %c0_156 = arith.constant 0 : index
    %c0_157 = arith.constant 0 : index
    %210 = vector.load %arg5[%c0_154, %c0_155, %c0_156, %c0_157] : memref<2x4x2x128xf32, #tpu.memory_space<vmem>>, vector<1x1x2x128xf32>
    %211 = vector.shape_cast %210 : vector<1x1x2x128xf32> to vector<2x128xf32>
    %212 = vector.broadcast %205 : vector<1x1xf32> to vector<2x128xf32>
    %213 = arith.mulf %211, %212 : vector<2x128xf32>
    %214 = vector.broadcast %209 : vector<1x1xf32> to vector<2x128xf32>
    %215 = arith.addf %213, %214 : vector<2x128xf32>
    %216 = math.tanh %215 : vector<2x128xf32>
    %c0_158 = arith.constant 0 : index
    %c0_159 = arith.constant 0 : index
    %c0_160 = arith.constant 0 : index
    %c0_161 = arith.constant 0 : index
    %217 = vector.load %arg4[%c0_158, %c0_159, %c0_160, %c0_161] : memref<2x4x2x128xf32, #tpu.memory_space<vmem>>, vector<1x1x2x128xf32>
    %218 = vector.shape_cast %217 : vector<1x1x2x128xf32> to vector<2x128xf32>
    %219 = vector.shape_cast %216 : vector<2x128xf32> to vector<1x1x2x128xf32>
    tpu.vector_store %arg4[%c0_158, %c0_159, %c0_160, %c0_161], %219 {strides = array<i32>} : memref<2x4x2x128xf32, #tpu.memory_space<vmem>>, vector<1x1x2x128xf32>,
    %c1_162 = arith.constant 1 : index
    %c0_163 = arith.constant 0 : index
    %c0_164 = arith.constant 0 : index
    %c0_165 = arith.constant 0 : index
    %220 = vector.load %arg5[%c1_162, %c0_163, %c0_164, %c0_165] : memref<2x4x2x128xf32, #tpu.memory_space<vmem>>, vector<1x1x2x128xf32>
    %221 = vector.shape_cast %220 : vector<1x1x2x128xf32> to vector<2x128xf32>
    %222 = vector.broadcast %205 : vector<1x1xf32> to vector<2x128xf32>
    %223 = arith.mulf %221, %222 : vector<2x128xf32>
    %224 = vector.broadcast %209 : vector<1x1xf32> to vector<2x128xf32>
    %225 = arith.addf %223, %224 : vector<2x128xf32>
    %226 = math.tanh %225 : vector<2x128xf32>
    %c1_166 = arith.constant 1 : index
    %c0_167 = arith.constant 0 : index
    %c0_168 = arith.constant 0 : index
    %c0_169 = arith.constant 0 : index
    %227 = vector.load %arg4[%c1_166, %c0_167, %c0_168, %c0_169] : memref<2x4x2x128xf32, #tpu.memory_space<vmem>>, vector<1x1x2x128xf32>
    %228 = vector.shape_cast %227 : vector<1x1x2x128xf32> to vector<2x128xf32>
    %229 = vector.shape_cast %226 : vector<2x128xf32> to vector<1x1x2x128xf32>
    tpu.vector_store %arg4[%c1_166, %c0_167, %c0_168, %c0_169], %229 {strides = array<i32>} : memref<2x4x2x128xf32, #tpu.memory_space<vmem>>, vector<1x1x2x128xf32>,
    %cst_170 = arith.constant 0.000000e+00 : f32
    %230 = vector.broadcast %cst_170 : f32 to vector<1x1xf32>
    %c0_171 = arith.constant 0 : index
    %c1_172 = arith.constant 1 : index
    %c0_173 = arith.constant 0 : index
    %c0_174 = arith.constant 0 : index
    %231 = vector.load %arg5[%c0_171, %c1_172, %c0_173, %c0_174] : memref<2x4x2x128xf32, #tpu.memory_space<vmem>>, vector<1x1x2x128xf32>
    %232 = vector.shape_cast %231 : vector<1x1x2x128xf32> to vector<2x128xf32>
    %cst_175 = arith.constant dense<0.000000e+00> : vector<128xf32>
    %233 = vector.multi_reduction <add>, %232, %cst_175 [0] : vector<2x128xf32> to vector<128xf32>
    %234 = vector.shape_cast %233 : vector<128xf32> to vector<1x128xf32>
    %cst_176 = arith.constant dense<0.000000e+00> : vector<1xf32>
    %235 = vector.multi_reduction <add>, %234, %cst_176 [1] : vector<1x128xf32> to vector<1xf32>
    %236 = vector.shape_cast %235 : vector<1xf32> to vector<1x1xf32>
    %237 = arith.addf %230, %236 : vector<1x1xf32>
    %c1_177 = arith.constant 1 : index
    %c1_178 = arith.constant 1 : index
    %c0_179 = arith.constant 0 : index
    %c0_180 = arith.constant 0 : index
    %238 = vector.load %arg5[%c1_177, %c1_178, %c0_179, %c0_180] : memref<2x4x2x128xf32, #tpu.memory_space<vmem>>, vector<1x1x2x128xf32>
    %239 = vector.shape_cast %238 : vector<1x1x2x128xf32> to vector<2x128xf32>
    %cst_181 = arith.constant dense<0.000000e+00> : vector<128xf32>
    %240 = vector.multi_reduction <add>, %239, %cst_181 [0] : vector<2x128xf32> to vector<128xf32>
    %241 = vector.shape_cast %240 : vector<128xf32> to vector<1x128xf32>
    %cst_182 = arith.constant dense<0.000000e+00> : vector<1xf32>
    %242 = vector.multi_reduction <add>, %241, %cst_182 [1] : vector<1x128xf32> to vector<1xf32>
    %243 = vector.shape_cast %242 : vector<1xf32> to vector<1x1xf32>
    %244 = arith.addf %237, %243 : vector<1x1xf32>
    %cst_183 = arith.constant 0.001953125 : f32
    %245 = vector.broadcast %cst_183 : f32 to vector<1x1xf32>
    %246 = arith.mulf %244, %245 : vector<1x1xf32>
    %cst_184 = arith.constant 0.000000e+00 : f32
    %247 = vector.broadcast %cst_184 : f32 to vector<1x1xf32>
    %c0_185 = arith.constant 0 : index
    %c1_186 = arith.constant 1 : index
    %c0_187 = arith.constant 0 : index
    %c0_188 = arith.constant 0 : index
    %248 = vector.load %arg5[%c0_185, %c1_186, %c0_187, %c0_188] : memref<2x4x2x128xf32, #tpu.memory_space<vmem>>, vector<1x1x2x128xf32>
    %249 = vector.shape_cast %248 : vector<1x1x2x128xf32> to vector<2x128xf32>
    %250 = vector.broadcast %246 : vector<1x1xf32> to vector<2x128xf32>
    %251 = arith.subf %249, %250 : vector<2x128xf32>
    %252 = arith.mulf %251, %251 : vector<2x128xf32>
    %cst_189 = arith.constant dense<0.000000e+00> : vector<128xf32>
    %253 = vector.multi_reduction <add>, %252, %cst_189 [0] : vector<2x128xf32> to vector<128xf32>
    %254 = vector.shape_cast %253 : vector<128xf32> to vector<1x128xf32>
    %cst_190 = arith.constant dense<0.000000e+00> : vector<1xf32>
    %255 = vector.multi_reduction <add>, %254, %cst_190 [1] : vector<1x128xf32> to vector<1xf32>
    %256 = vector.shape_cast %255 : vector<1xf32> to vector<1x1xf32>
    %257 = arith.addf %247, %256 : vector<1x1xf32>
    %c1_191 = arith.constant 1 : index
    %c1_192 = arith.constant 1 : index
    %c0_193 = arith.constant 0 : index
    %c0_194 = arith.constant 0 : index
    %258 = vector.load %arg5[%c1_191, %c1_192, %c0_193, %c0_194] : memref<2x4x2x128xf32, #tpu.memory_space<vmem>>, vector<1x1x2x128xf32>
    %259 = vector.shape_cast %258 : vector<1x1x2x128xf32> to vector<2x128xf32>
    %260 = vector.broadcast %246 : vector<1x1xf32> to vector<2x128xf32>
    %261 = arith.subf %259, %260 : vector<2x128xf32>
    %262 = arith.mulf %261, %261 : vector<2x128xf32>
    %cst_195 = arith.constant dense<0.000000e+00> : vector<128xf32>
    %263 = vector.multi_reduction <add>, %262, %cst_195 [0] : vector<2x128xf32> to vector<128xf32>
    %264 = vector.shape_cast %263 : vector<128xf32> to vector<1x128xf32>
    %cst_196 = arith.constant dense<0.000000e+00> : vector<1xf32>
    %265 = vector.multi_reduction <add>, %264, %cst_196 [1] : vector<1x128xf32> to vector<1xf32>
    %266 = vector.shape_cast %265 : vector<1xf32> to vector<1x1xf32>
    %267 = arith.addf %257, %266 : vector<1x1xf32>
    %cst_197 = arith.constant 0.001953125 : f32
    %268 = vector.broadcast %cst_197 : f32 to vector<1x1xf32>
    %269 = arith.mulf %267, %268 : vector<1x1xf32>
    %c1_198 = arith.constant 1 : index
    %270 = memref.load %arg1[%c1_198] : memref<4xf32, #tpu.memory_space<smem>>
    %cst_199 = arith.constant 9.99999974E-6 : f32
    %271 = vector.broadcast %cst_199 : f32 to vector<1x1xf32>
    %272 = arith.addf %269, %271 : vector<1x1xf32>
    %273 = math.rsqrt %272 : vector<1x1xf32>
    %274 = vector.broadcast %270 : f32 to vector<1x1xf32>
    %275 = arith.mulf %274, %273 : vector<1x1xf32>
    %c1_200 = arith.constant 1 : index
    %276 = memref.load %arg2[%c1_200] : memref<4xf32, #tpu.memory_space<smem>>
    %277 = arith.mulf %246, %275 : vector<1x1xf32>
    %278 = vector.broadcast %276 : f32 to vector<1x1xf32>
    %279 = arith.subf %278, %277 : vector<1x1xf32>
    %c0_201 = arith.constant 0 : index
    %c1_202 = arith.constant 1 : index
    %c0_203 = arith.constant 0 : index
    %c0_204 = arith.constant 0 : index
    %280 = vector.load %arg5[%c0_201, %c1_202, %c0_203, %c0_204] : memref<2x4x2x128xf32, #tpu.memory_space<vmem>>, vector<1x1x2x128xf32>
    %281 = vector.shape_cast %280 : vector<1x1x2x128xf32> to vector<2x128xf32>
    %282 = vector.broadcast %275 : vector<1x1xf32> to vector<2x128xf32>
    %283 = arith.mulf %281, %282 : vector<2x128xf32>
    %284 = vector.broadcast %279 : vector<1x1xf32> to vector<2x128xf32>
    %285 = arith.addf %283, %284 : vector<2x128xf32>
    %286 = math.tanh %285 : vector<2x128xf32>
    %c0_205 = arith.constant 0 : index
    %c1_206 = arith.constant 1 : index
    %c0_207 = arith.constant 0 : index
    %c0_208 = arith.constant 0 : index
    %287 = vector.load %arg4[%c0_205, %c1_206, %c0_207, %c0_208] : memref<2x4x2x128xf32, #tpu.memory_space<vmem>>, vector<1x1x2x128xf32>
    %288 = vector.shape_cast %287 : vector<1x1x2x128xf32> to vector<2x128xf32>
    %289 = vector.shape_cast %286 : vector<2x128xf32> to vector<1x1x2x128xf32>
    tpu.vector_store %arg4[%c0_205, %c1_206, %c0_207, %c0_208], %289 {strides = array<i32>} : memref<2x4x2x128xf32, #tpu.memory_space<vmem>>, vector<1x1x2x128xf32>,
    %c1_209 = arith.constant 1 : index
    %c1_210 = arith.constant 1 : index
    %c0_211 = arith.constant 0 : index
    %c0_212 = arith.constant 0 : index
    %290 = vector.load %arg5[%c1_209, %c1_210, %c0_211, %c0_212] : memref<2x4x2x128xf32, #tpu.memory_space<vmem>>, vector<1x1x2x128xf32>
    %291 = vector.shape_cast %290 : vector<1x1x2x128xf32> to vector<2x128xf32>
    %292 = vector.broadcast %275 : vector<1x1xf32> to vector<2x128xf32>
    %293 = arith.mulf %291, %292 : vector<2x128xf32>
    %294 = vector.broadcast %279 : vector<1x1xf32> to vector<2x128xf32>
    %295 = arith.addf %293, %294 : vector<2x128xf32>
    %296 = math.tanh %295 : vector<2x128xf32>
    %c1_213 = arith.constant 1 : index
    %c1_214 = arith.constant 1 : index
    %c0_215 = arith.constant 0 : index
    %c0_216 = arith.constant 0 : index
    %297 = vector.load %arg4[%c1_213, %c1_214, %c0_215, %c0_216] : memref<2x4x2x128xf32, #tpu.memory_space<vmem>>, vector<1x1x2x128xf32>
    %298 = vector.shape_cast %297 : vector<1x1x2x128xf32> to vector<2x128xf32>
    %299 = vector.shape_cast %296 : vector<2x128xf32> to vector<1x1x2x128xf32>
    tpu.vector_store %arg4[%c1_213, %c1_214, %c0_215, %c0_216], %299 {strides = array<i32>} : memref<2x4x2x128xf32, #tpu.memory_space<vmem>>, vector<1x1x2x128xf32>,
    %cst_217 = arith.constant 0.000000e+00 : f32
    %300 = vector.broadcast %cst_217 : f32 to vector<1x1xf32>
    %c0_218 = arith.constant 0 : index
    %c2_219 = arith.constant 2 : index
    %c0_220 = arith.constant 0 : index
    %c0_221 = arith.constant 0 : index
    %301 = vector.load %arg5[%c0_218, %c2_219, %c0_220, %c0_221] : memref<2x4x2x128xf32, #tpu.memory_space<vmem>>, vector<1x1x2x128xf32>
    %302 = vector.shape_cast %301 : vector<1x1x2x128xf32> to vector<2x128xf32>
    %cst_222 = arith.constant dense<0.000000e+00> : vector<128xf32>
    %303 = vector.multi_reduction <add>, %302, %cst_222 [0] : vector<2x128xf32> to vector<128xf32>
    %304 = vector.shape_cast %303 : vector<128xf32> to vector<1x128xf32>
    %cst_223 = arith.constant dense<0.000000e+00> : vector<1xf32>
    %305 = vector.multi_reduction <add>, %304, %cst_223 [1] : vector<1x128xf32> to vector<1xf32>
    %306 = vector.shape_cast %305 : vector<1xf32> to vector<1x1xf32>
    %307 = arith.addf %300, %306 : vector<1x1xf32>
    %c1_224 = arith.constant 1 : index
    %c2_225 = arith.constant 2 : index
    %c0_226 = arith.constant 0 : index
    %c0_227 = arith.constant 0 : index
    %308 = vector.load %arg5[%c1_224, %c2_225, %c0_226, %c0_227] : memref<2x4x2x128xf32, #tpu.memory_space<vmem>>, vector<1x1x2x128xf32>
    %309 = vector.shape_cast %308 : vector<1x1x2x128xf32> to vector<2x128xf32>
    %cst_228 = arith.constant dense<0.000000e+00> : vector<128xf32>
    %310 = vector.multi_reduction <add>, %309, %cst_228 [0] : vector<2x128xf32> to vector<128xf32>
    %311 = vector.shape_cast %310 : vector<128xf32> to vector<1x128xf32>
    %cst_229 = arith.constant dense<0.000000e+00> : vector<1xf32>
    %312 = vector.multi_reduction <add>, %311, %cst_229 [1] : vector<1x128xf32> to vector<1xf32>
    %313 = vector.shape_cast %312 : vector<1xf32> to vector<1x1xf32>
    %314 = arith.addf %307, %313 : vector<1x1xf32>
    %cst_230 = arith.constant 0.001953125 : f32
    %315 = vector.broadcast %cst_230 : f32 to vector<1x1xf32>
    %316 = arith.mulf %314, %315 : vector<1x1xf32>
    %cst_231 = arith.constant 0.000000e+00 : f32
    %317 = vector.broadcast %cst_231 : f32 to vector<1x1xf32>
    %c0_232 = arith.constant 0 : index
    %c2_233 = arith.constant 2 : index
    %c0_234 = arith.constant 0 : index
    %c0_235 = arith.constant 0 : index
    %318 = vector.load %arg5[%c0_232, %c2_233, %c0_234, %c0_235] : memref<2x4x2x128xf32, #tpu.memory_space<vmem>>, vector<1x1x2x128xf32>
    %319 = vector.shape_cast %318 : vector<1x1x2x128xf32> to vector<2x128xf32>
    %320 = vector.broadcast %316 : vector<1x1xf32> to vector<2x128xf32>
    %321 = arith.subf %319, %320 : vector<2x128xf32>
    %322 = arith.mulf %321, %321 : vector<2x128xf32>
    %cst_236 = arith.constant dense<0.000000e+00> : vector<128xf32>
    %323 = vector.multi_reduction <add>, %322, %cst_236 [0] : vector<2x128xf32> to vector<128xf32>
    %324 = vector.shape_cast %323 : vector<128xf32> to vector<1x128xf32>
    %cst_237 = arith.constant dense<0.000000e+00> : vector<1xf32>
    %325 = vector.multi_reduction <add>, %324, %cst_237 [1] : vector<1x128xf32> to vector<1xf32>
    %326 = vector.shape_cast %325 : vector<1xf32> to vector<1x1xf32>
    %327 = arith.addf %317, %326 : vector<1x1xf32>
    %c1_238 = arith.constant 1 : index
    %c2_239 = arith.constant 2 : index
    %c0_240 = arith.constant 0 : index
    %c0_241 = arith.constant 0 : index
    %328 = vector.load %arg5[%c1_238, %c2_239, %c0_240, %c0_241] : memref<2x4x2x128xf32, #tpu.memory_space<vmem>>, vector<1x1x2x128xf32>
    %329 = vector.shape_cast %328 : vector<1x1x2x128xf32> to vector<2x128xf32>
    %330 = vector.broadcast %316 : vector<1x1xf32> to vector<2x128xf32>
    %331 = arith.subf %329, %330 : vector<2x128xf32>
    %332 = arith.mulf %331, %331 : vector<2x128xf32>
    %cst_242 = arith.constant dense<0.000000e+00> : vector<128xf32>
    %333 = vector.multi_reduction <add>, %332, %cst_242 [0] : vector<2x128xf32> to vector<128xf32>
    %334 = vector.shape_cast %333 : vector<128xf32> to vector<1x128xf32>
    %cst_243 = arith.constant dense<0.000000e+00> : vector<1xf32>
    %335 = vector.multi_reduction <add>, %334, %cst_243 [1] : vector<1x128xf32> to vector<1xf32>
    %336 = vector.shape_cast %335 : vector<1xf32> to vector<1x1xf32>
    %337 = arith.addf %327, %336 : vector<1x1xf32>
    %cst_244 = arith.constant 0.001953125 : f32
    %338 = vector.broadcast %cst_244 : f32 to vector<1x1xf32>
    %339 = arith.mulf %337, %338 : vector<1x1xf32>
    %c2_245 = arith.constant 2 : index
    %340 = memref.load %arg1[%c2_245] : memref<4xf32, #tpu.memory_space<smem>>
    %cst_246 = arith.constant 9.99999974E-6 : f32
    %341 = vector.broadcast %cst_246 : f32 to vector<1x1xf32>
    %342 = arith.addf %339, %341 : vector<1x1xf32>
    %343 = math.rsqrt %342 : vector<1x1xf32>
    %344 = vector.broadcast %340 : f32 to vector<1x1xf32>
    %345 = arith.mulf %344, %343 : vector<1x1xf32>
    %c2_247 = arith.constant 2 : index
    %346 = memref.load %arg2[%c2_247] : memref<4xf32, #tpu.memory_space<smem>>
    %347 = arith.mulf %316, %345 : vector<1x1xf32>
    %348 = vector.broadcast %346 : f32 to vector<1x1xf32>
    %349 = arith.subf %348, %347 : vector<1x1xf32>
    %c0_248 = arith.constant 0 : index
    %c2_249 = arith.constant 2 : index
    %c0_250 = arith.constant 0 : index
    %c0_251 = arith.constant 0 : index
    %350 = vector.load %arg5[%c0_248, %c2_249, %c0_250, %c0_251] : memref<2x4x2x128xf32, #tpu.memory_space<vmem>>, vector<1x1x2x128xf32>
    %351 = vector.shape_cast %350 : vector<1x1x2x128xf32> to vector<2x128xf32>
    %352 = vector.broadcast %345 : vector<1x1xf32> to vector<2x128xf32>
    %353 = arith.mulf %351, %352 : vector<2x128xf32>
    %354 = vector.broadcast %349 : vector<1x1xf32> to vector<2x128xf32>
    %355 = arith.addf %353, %354 : vector<2x128xf32>
    %356 = math.tanh %355 : vector<2x128xf32>
    %c0_252 = arith.constant 0 : index
    %c2_253 = arith.constant 2 : index
    %c0_254 = arith.constant 0 : index
    %c0_255 = arith.constant 0 : index
    %357 = vector.load %arg4[%c0_252, %c2_253, %c0_254, %c0_255] : memref<2x4x2x128xf32, #tpu.memory_space<vmem>>, vector<1x1x2x128xf32>
    %358 = vector.shape_cast %357 : vector<1x1x2x128xf32> to vector<2x128xf32>
    %359 = vector.shape_cast %356 : vector<2x128xf32> to vector<1x1x2x128xf32>
    tpu.vector_store %arg4[%c0_252, %c2_253, %c0_254, %c0_255], %359 {strides = array<i32>} : memref<2x4x2x128xf32, #tpu.memory_space<vmem>>, vector<1x1x2x128xf32>,
    %c1_256 = arith.constant 1 : index
    %c2_257 = arith.constant 2 : index
    %c0_258 = arith.constant 0 : index
    %c0_259 = arith.constant 0 : index
    %360 = vector.load %arg5[%c1_256, %c2_257, %c0_258, %c0_259] : memref<2x4x2x128xf32, #tpu.memory_space<vmem>>, vector<1x1x2x128xf32>
    %361 = vector.shape_cast %360 : vector<1x1x2x128xf32> to vector<2x128xf32>
    %362 = vector.broadcast %345 : vector<1x1xf32> to vector<2x128xf32>
    %363 = arith.mulf %361, %362 : vector<2x128xf32>
    %364 = vector.broadcast %349 : vector<1x1xf32> to vector<2x128xf32>
    %365 = arith.addf %363, %364 : vector<2x128xf32>
    %366 = math.tanh %365 : vector<2x128xf32>
    %c1_260 = arith.constant 1 : index
    %c2_261 = arith.constant 2 : index
    %c0_262 = arith.constant 0 : index
    %c0_263 = arith.constant 0 : index
    %367 = vector.load %arg4[%c1_260, %c2_261, %c0_262, %c0_263] : memref<2x4x2x128xf32, #tpu.memory_space<vmem>>, vector<1x1x2x128xf32>
    %368 = vector.shape_cast %367 : vector<1x1x2x128xf32> to vector<2x128xf32>
    %369 = vector.shape_cast %366 : vector<2x128xf32> to vector<1x1x2x128xf32>
    tpu.vector_store %arg4[%c1_260, %c2_261, %c0_262, %c0_263], %369 {strides = array<i32>} : memref<2x4x2x128xf32, #tpu.memory_space<vmem>>, vector<1x1x2x128xf32>,
    %cst_264 = arith.constant 0.000000e+00 : f32
    %370 = vector.broadcast %cst_264 : f32 to vector<1x1xf32>
    %c0_265 = arith.constant 0 : index
    %c3_266 = arith.constant 3 : index
    %c0_267 = arith.constant 0 : index
    %c0_268 = arith.constant 0 : index
    %371 = vector.load %arg5[%c0_265, %c3_266, %c0_267, %c0_268] : memref<2x4x2x128xf32, #tpu.memory_space<vmem>>, vector<1x1x2x128xf32>
    %372 = vector.shape_cast %371 : vector<1x1x2x128xf32> to vector<2x128xf32>
    %cst_269 = arith.constant dense<0.000000e+00> : vector<128xf32>
    %373 = vector.multi_reduction <add>, %372, %cst_269 [0] : vector<2x128xf32> to vector<128xf32>
    %374 = vector.shape_cast %373 : vector<128xf32> to vector<1x128xf32>
    %cst_270 = arith.constant dense<0.000000e+00> : vector<1xf32>
    %375 = vector.multi_reduction <add>, %374, %cst_270 [1] : vector<1x128xf32> to vector<1xf32>
    %376 = vector.shape_cast %375 : vector<1xf32> to vector<1x1xf32>
    %377 = arith.addf %370, %376 : vector<1x1xf32>
    %c1_271 = arith.constant 1 : index
    %c3_272 = arith.constant 3 : index
    %c0_273 = arith.constant 0 : index
    %c0_274 = arith.constant 0 : index
    %378 = vector.load %arg5[%c1_271, %c3_272, %c0_273, %c0_274] : memref<2x4x2x128xf32, #tpu.memory_space<vmem>>, vector<1x1x2x128xf32>
    %379 = vector.shape_cast %378 : vector<1x1x2x128xf32> to vector<2x128xf32>
    %cst_275 = arith.constant dense<0.000000e+00> : vector<128xf32>
    %380 = vector.multi_reduction <add>, %379, %cst_275 [0] : vector<2x128xf32> to vector<128xf32>
    %381 = vector.shape_cast %380 : vector<128xf32> to vector<1x128xf32>
    %cst_276 = arith.constant dense<0.000000e+00> : vector<1xf32>
    %382 = vector.multi_reduction <add>, %381, %cst_276 [1] : vector<1x128xf32> to vector<1xf32>
    %383 = vector.shape_cast %382 : vector<1xf32> to vector<1x1xf32>
    %384 = arith.addf %377, %383 : vector<1x1xf32>
    %cst_277 = arith.constant 0.001953125 : f32
    %385 = vector.broadcast %cst_277 : f32 to vector<1x1xf32>
    %386 = arith.mulf %384, %385 : vector<1x1xf32>
    %cst_278 = arith.constant 0.000000e+00 : f32
    %387 = vector.broadcast %cst_278 : f32 to vector<1x1xf32>
    %c0_279 = arith.constant 0 : index
    %c3_280 = arith.constant 3 : index
    %c0_281 = arith.constant 0 : index
    %c0_282 = arith.constant 0 : index
    %388 = vector.load %arg5[%c0_279, %c3_280, %c0_281, %c0_282] : memref<2x4x2x128xf32, #tpu.memory_space<vmem>>, vector<1x1x2x128xf32>
    %389 = vector.shape_cast %388 : vector<1x1x2x128xf32> to vector<2x128xf32>
    %390 = vector.broadcast %386 : vector<1x1xf32> to vector<2x128xf32>
    %391 = arith.subf %389, %390 : vector<2x128xf32>
    %392 = arith.mulf %391, %391 : vector<2x128xf32>
    %cst_283 = arith.constant dense<0.000000e+00> : vector<128xf32>
    %393 = vector.multi_reduction <add>, %392, %cst_283 [0] : vector<2x128xf32> to vector<128xf32>
    %394 = vector.shape_cast %393 : vector<128xf32> to vector<1x128xf32>
    %cst_284 = arith.constant dense<0.000000e+00> : vector<1xf32>
    %395 = vector.multi_reduction <add>, %394, %cst_284 [1] : vector<1x128xf32> to vector<1xf32>
    %396 = vector.shape_cast %395 : vector<1xf32> to vector<1x1xf32>
    %397 = arith.addf %387, %396 : vector<1x1xf32>
    %c1_285 = arith.constant 1 : index
    %c3_286 = arith.constant 3 : index
    %c0_287 = arith.constant 0 : index
    %c0_288 = arith.constant 0 : index
    %398 = vector.load %arg5[%c1_285, %c3_286, %c0_287, %c0_288] : memref<2x4x2x128xf32, #tpu.memory_space<vmem>>, vector<1x1x2x128xf32>
    %399 = vector.shape_cast %398 : vector<1x1x2x128xf32> to vector<2x128xf32>
    %400 = vector.broadcast %386 : vector<1x1xf32> to vector<2x128xf32>
    %401 = arith.subf %399, %400 : vector<2x128xf32>
    %402 = arith.mulf %401, %401 : vector<2x128xf32>
    %cst_289 = arith.constant dense<0.000000e+00> : vector<128xf32>
    %403 = vector.multi_reduction <add>, %402, %cst_289 [0] : vector<2x128xf32> to vector<128xf32>
    %404 = vector.shape_cast %403 : vector<128xf32> to vector<1x128xf32>
    %cst_290 = arith.constant dense<0.000000e+00> : vector<1xf32>
    %405 = vector.multi_reduction <add>, %404, %cst_290 [1] : vector<1x128xf32> to vector<1xf32>
    %406 = vector.shape_cast %405 : vector<1xf32> to vector<1x1xf32>
    %407 = arith.addf %397, %406 : vector<1x1xf32>
    %cst_291 = arith.constant 0.001953125 : f32
    %408 = vector.broadcast %cst_291 : f32 to vector<1x1xf32>
    %409 = arith.mulf %407, %408 : vector<1x1xf32>
    %c3_292 = arith.constant 3 : index
    %410 = memref.load %arg1[%c3_292] : memref<4xf32, #tpu.memory_space<smem>>
    %cst_293 = arith.constant 9.99999974E-6 : f32
    %411 = vector.broadcast %cst_293 : f32 to vector<1x1xf32>
    %412 = arith.addf %409, %411 : vector<1x1xf32>
    %413 = math.rsqrt %412 : vector<1x1xf32>
    %414 = vector.broadcast %410 : f32 to vector<1x1xf32>
    %415 = arith.mulf %414, %413 : vector<1x1xf32>
    %c3_294 = arith.constant 3 : index
    %416 = memref.load %arg2[%c3_294] : memref<4xf32, #tpu.memory_space<smem>>
    %417 = arith.mulf %386, %415 : vector<1x1xf32>
    %418 = vector.broadcast %416 : f32 to vector<1x1xf32>
    %419 = arith.subf %418, %417 : vector<1x1xf32>
    %c0_295 = arith.constant 0 : index
    %c3_296 = arith.constant 3 : index
    %c0_297 = arith.constant 0 : index
    %c0_298 = arith.constant 0 : index
    %420 = vector.load %arg5[%c0_295, %c3_296, %c0_297, %c0_298] : memref<2x4x2x128xf32, #tpu.memory_space<vmem>>, vector<1x1x2x128xf32>
    %421 = vector.shape_cast %420 : vector<1x1x2x128xf32> to vector<2x128xf32>
    %422 = vector.broadcast %415 : vector<1x1xf32> to vector<2x128xf32>
    %423 = arith.mulf %421, %422 : vector<2x128xf32>
    %424 = vector.broadcast %419 : vector<1x1xf32> to vector<2x128xf32>
    %425 = arith.addf %423, %424 : vector<2x128xf32>
    %426 = math.tanh %425 : vector<2x128xf32>
    %c0_299 = arith.constant 0 : index
    %c3_300 = arith.constant 3 : index
    %c0_301 = arith.constant 0 : index
    %c0_302 = arith.constant 0 : index
    %427 = vector.load %arg4[%c0_299, %c3_300, %c0_301, %c0_302] : memref<2x4x2x128xf32, #tpu.memory_space<vmem>>, vector<1x1x2x128xf32>
    %428 = vector.shape_cast %427 : vector<1x1x2x128xf32> to vector<2x128xf32>
    %429 = vector.shape_cast %426 : vector<2x128xf32> to vector<1x1x2x128xf32>
    tpu.vector_store %arg4[%c0_299, %c3_300, %c0_301, %c0_302], %429 {strides = array<i32>} : memref<2x4x2x128xf32, #tpu.memory_space<vmem>>, vector<1x1x2x128xf32>,
    %c1_303 = arith.constant 1 : index
    %c3_304 = arith.constant 3 : index
    %c0_305 = arith.constant 0 : index
    %c0_306 = arith.constant 0 : index
    %430 = vector.load %arg5[%c1_303, %c3_304, %c0_305, %c0_306] : memref<2x4x2x128xf32, #tpu.memory_space<vmem>>, vector<1x1x2x128xf32>
    %431 = vector.shape_cast %430 : vector<1x1x2x128xf32> to vector<2x128xf32>
    %432 = vector.broadcast %415 : vector<1x1xf32> to vector<2x128xf32>
    %433 = arith.mulf %431, %432 : vector<2x128xf32>
    %434 = vector.broadcast %419 : vector<1x1xf32> to vector<2x128xf32>
    %435 = arith.addf %433, %434 : vector<2x128xf32>
    %436 = math.tanh %435 : vector<2x128xf32>
    %c1_307 = arith.constant 1 : index
    %c3_308 = arith.constant 3 : index
    %c0_309 = arith.constant 0 : index
    %c0_310 = arith.constant 0 : index
    %437 = vector.load %arg4[%c1_307, %c3_308, %c0_309, %c0_310] : memref<2x4x2x128xf32, #tpu.memory_space<vmem>>, vector<1x1x2x128xf32>
    %438 = vector.shape_cast %437 : vector<1x1x2x128xf32> to vector<2x128xf32>
    %439 = vector.shape_cast %436 : vector<2x128xf32> to vector<1x1x2x128xf32>
    tpu.vector_store %arg4[%c1_307, %c3_308, %c0_309, %c0_310], %439 {strides = array<i32>} : memref<2x4x2x128xf32, #tpu.memory_space<vmem>>, vector<1x1x2x128xf32>,
    return
  }
}

</mosaic_0001>

<llo_original>
// kernel: pde_function.1
$region0: #{pde_function.1}
  #allocation0 [shape = 'u32[]', space=smem, size = 0x4, offset = 0x4, fixed_abs, tag = 'smem constant byte address 0x4 - core index']
  #allocation1 [shape = 'u32[72,128]{1,0:T(1,128)}', space=vmem, size = 0x9000, scoped, tag = 'internal scratch']
  #allocation2 [shape = 'f32[2,4,2,128]{3,2,1,0:T(2,128)}', space=vmem, size = 0x2000, scoped, tag = 'scratch operand']
  %s0 = inlined_call_operand.vmem [shape: f32[4,4], index: 0, kind: input, shape index: {}]
  %s1 = inlined_call_operand.vmem [shape: f32[4], index: 1, kind: input, shape index: {}]
  %s2 = inlined_call_operand.vmem [shape: f32[4], index: 2, kind: input, shape index: {}]
  %s3 = inlined_call_operand.vmem [shape: f32[2,4,2,128], index: 3, kind: input, shape index: {}]
  %s4 = inlined_call_operand.vmem [shape: f32[2,4,2,128], index: 4, kind: output, shape index: {}]
  %s5 = sld [smem:[#allocation0]]
  $region38: #{pde_function.1} parent=0
    _
  %s7 = ssub.s32 1, %s5
  %s8 = scalar_select 0, %s7, %s5
  $region1: #{pde_function.1} parent=0
    #allocation3 [shape = 'u8[2048]{0}', space=smem, size = 0x800, scoped, tag = 'input window, operand 0, single buffered']
    #allocation4 [shape = 's32[1]{0}', space=sflag, size = 0x4, scoped, tag = 'scoped memory for pde_function.1']
    #allocation5 [shape = 'u8[512]{0}', space=smem, size = 0x200, scoped, tag = 'input window, operand 1, single buffered']
    #allocation6 [shape = 's32[1]{0}', space=sflag, size = 0x4, scoped, tag = 'scoped memory for pde_function.1']
    #allocation7 [shape = 'u8[512]{0}', space=smem, size = 0x200, scoped, tag = 'input window, operand 2, single buffered']
    %9 = vsyncpa [#allocation4], 0
    %10 = vsyncpa [#allocation6], 0
    // Predicated region
    $region2: #{pde_function.1} parent=1 // pred_check
      _
    $region3: #{pde_function.1} parent=1 // pred_check_branch
      %12 = sbr.rel (0) target = $region5
    $region4: #{pde_function.1} parent=1 // pred_region
      %14 = vsyncadd [#allocation4], 0
      %s16 = sshll.u32 %s0, 4
      %s17 = int_to_ptr.vmem [resolvable:$true] %s16
      %19 = dma.vmem_to_smem %s17, 64, [#allocation3], [#allocation4]
    $region5: #{pde_function.1} parent=1 // pred_fallthru
      _
    // Predicated region
    $region6: #{pde_function.1} parent=1 // pred_check
      _
    $region7: #{pde_function.1} parent=1 // pred_check_branch
      %21 = sbr.rel (0) target = $region9
    $region8: #{pde_function.1} parent=1 // pred_region
      %23 = vsyncadd [#allocation6], 0
      %s25 = sshll.u32 %s1, 4
      %s26 = int_to_ptr.vmem [resolvable:$true] %s25
      %28 = dma.vmem_to_smem %s26, 16, [#allocation5], [#allocation6]
    $region9: #{pde_function.1} parent=1 // pred_fallthru
      _
    // Predicated region
    $region10: #{pde_function.1} parent=1 // pred_check
      _
    $region11: #{pde_function.1} parent=1 // pred_check_branch
      %30 = sbr.rel (0) target = $region13
    $region12: #{pde_function.1} parent=1 // pred_region
      %32 = vsyncadd [#allocation6], 0
      %s34 = sshll.u32 %s2, 4
      %s35 = int_to_ptr.vmem [resolvable:$true] %s34
      %37 = dma.vmem_to_smem %s35, 16, [#allocation7], [#allocation6]
    $region13: #{pde_function.1} parent=1 // pred_fallthru
      _
    // Predicated region
    $region14: #{pde_function.1} parent=1 // pred_check
      _
    $region15: #{pde_function.1} parent=1 // pred_check_branch
      %39 = sbr.rel (0) target = $region17
    $region16: #{pde_function.1} parent=1 // pred_region
      _
    $region17: #{pde_function.1} parent=1 // pred_fallthru
      _
    // Predicated region
    $region18: #{pde_function.1} parent=1 // pred_check
      _
    $region19: #{pde_function.1} parent=1 // pred_check_branch
      %41 = sbr.rel (0) target = $region21
    $region20: #{pde_function.1} parent=1 // pred_region
      %43 = dma.done [#allocation4], 64
    $region21: #{pde_function.1} parent=1 // pred_fallthru
      _
    // Predicated region
    $region22: #{pde_function.1} parent=1 // pred_check
      _
    $region23: #{pde_function.1} parent=1 // pred_check_branch
      %45 = sbr.rel (0) target = $region25
    $region24: #{pde_function.1} parent=1 // pred_region
      %47 = dma.done [#allocation6], 16
    $region25: #{pde_function.1} parent=1 // pred_fallthru
      _
    // Predicated region
    $region26: #{pde_function.1} parent=1 // pred_check
      _
    $region27: #{pde_function.1} parent=1 // pred_check_branch
      %49 = sbr.rel (0) target = $region29
    $region28: #{pde_function.1} parent=1 // pred_region
      %51 = dma.done [#allocation6], 16
    $region29: #{pde_function.1} parent=1 // pred_fallthru
      _
    %52 = sfence
    %v53 = vld [vmem:[%s3] sm:$0x3]
    %s54 = scalar_lea.vmem %s3, 2
    %v55 = vld [vmem:[%s54] sm:$0x3]
    %s56 = scalar_lea.vmem %s3, 4
    %v57 = vld [vmem:[%s56] sm:$0x3]
    %s58 = scalar_lea.vmem %s3, 6
    %v59 = vld [vmem:[%s58] sm:$0x3]
    %s60 = sld [smem:[#allocation3]]
    %v61 = vstv %s60
    %v62 = vmul.f32 %v53, %v61
    %s63 = sld [smem:[#allocation3 + $0x1]]
    %v64 = vstv %s63
    %v65 = vmul.f32 %v55, %v64
    %v66 = vadd.f32 %v62, %v65
    %s67 = sld [smem:[#allocation3 + $0x2]]
    %v68 = vstv %s67
    %v69 = vmul.f32 %v57, %v68
    %v70 = vadd.f32 %v66, %v69
    %s71 = sld [smem:[#allocation3 + $0x3]]
    %v72 = vstv %s71
    %v73 = vmul.f32 %v59, %v72
    %v74 = vadd.f32 %v70, %v73
    %75 = vst [vmem:[#allocation2] sm:$0x3] %v74
    %s76 = sld [smem:[#allocation3 + $0x80]]
    %v77 = vstv %s76
    %v78 = vmul.f32 %v53, %v77
    %s79 = sld [smem:[#allocation3 + $0x81]]
    %v80 = vstv %s79
    %v81 = vmul.f32 %v55, %v80
    %v82 = vadd.f32 %v78, %v81
    %s83 = sld [smem:[#allocation3 + $0x82]]
    %v84 = vstv %s83
    %v85 = vmul.f32 %v57, %v84
    %v86 = vadd.f32 %v82, %v85
    %s87 = sld [smem:[#allocation3 + $0x83]]
    %v88 = vstv %s87
    %v89 = vmul.f32 %v59, %v88
    %v90 = vadd.f32 %v86, %v89
    %s91 = scalar_lea.vmem [#allocation2], 2
    %92 = vst [vmem:[%s91] sm:$0x3] %v90
    %s93 = sld [smem:[#allocation3 + $0x100]]
    %v94 = vstv %s93
    %v95 = vmul.f32 %v53, %v94
    %s96 = sld [smem:[#allocation3 + $0x101]]
    %v97 = vstv %s96
    %v98 = vmul.f32 %v55, %v97
    %v99 = vadd.f32 %v95, %v98
    %s100 = sld [smem:[#allocation3 + $0x102]]
    %v101 = vstv %s100
    %v102 = vmul.f32 %v57, %v101
    %v103 = vadd.f32 %v99, %v102
    %s104 = sld [smem:[#allocation3 + $0x103]]
    %v105 = vstv %s104
    %v106 = vmul.f32 %v59, %v105
    %v107 = vadd.f32 %v103, %v106
    %s108 = scalar_lea.vmem [#allocation2], 4
    %109 = vst [vmem:[%s108] sm:$0x3] %v107
    %s110 = sld [smem:[#allocation3 + $0x180]]
    %v111 = vstv %s110
    %v112 = vmul.f32 %v53, %v111
    %s113 = sld [smem:[#allocation3 + $0x181]]
    %v114 = vstv %s113
    %v115 = vmul.f32 %v55, %v114
    %v116 = vadd.f32 %v112, %v115
    %s117 = sld [smem:[#allocation3 + $0x182]]
    %v118 = vstv %s117
    %v119 = vmul.f32 %v57, %v118
    %v120 = vadd.f32 %v116, %v119
    %s121 = sld [smem:[#allocation3 + $0x183]]
    %v122 = vstv %s121
    %v123 = vmul.f32 %v59, %v122
    %v124 = vadd.f32 %v120, %v123
    %s125 = scalar_lea.vmem [#allocation2], 6
    %126 = vst [vmem:[%s125] sm:$0x3] %v124
    %s127 = scalar_lea.vmem %s3, 8
    %v128 = vld [vmem:[%s127] sm:$0x3]
    %s129 = scalar_lea.vmem %s3, 10
    %v130 = vld [vmem:[%s129] sm:$0x3]
    %s131 = scalar_lea.vmem %s3, 12
    %v132 = vld [vmem:[%s131] sm:$0x3]
    %s133 = scalar_lea.vmem %s3, 14
    %v134 = vld [vmem:[%s133] sm:$0x3]
    %s135 = sld [smem:[#allocation3]]
    %v136 = vstv %s135
    %v137 = vmul.f32 %v128, %v136
    %s138 = sld [smem:[#allocation3 + $0x1]]
    %v139 = vstv %s138
    %v140 = vmul.f32 %v130, %v139
    %v141 = vadd.f32 %v137, %v140
    %s142 = sld [smem:[#allocation3 + $0x2]]
    %v143 = vstv %s142
    %v144 = vmul.f32 %v132, %v143
    %v145 = vadd.f32 %v141, %v144
    %s146 = sld [smem:[#allocation3 + $0x3]]
    %v147 = vstv %s146
    %v148 = vmul.f32 %v134, %v147
    %v149 = vadd.f32 %v145, %v148
    %s150 = scalar_lea.vmem [#allocation2], 8
    %151 = vst [vmem:[%s150] sm:$0x3] %v149
    %s152 = sld [smem:[#allocation3 + $0x80]]
    %v153 = vstv %s152
    %v154 = vmul.f32 %v128, %v153
    %s155 = sld [smem:[#allocation3 + $0x81]]
    %v156 = vstv %s155
    %v157 = vmul.f32 %v130, %v156
    %v158 = vadd.f32 %v154, %v157
    %s159 = sld [smem:[#allocation3 + $0x82]]
    %v160 = vstv %s159
    %v161 = vmul.f32 %v132, %v160
    %v162 = vadd.f32 %v158, %v161
    %s163 = sld [smem:[#allocation3 + $0x83]]
    %v164 = vstv %s163
    %v165 = vmul.f32 %v134, %v164
    %v166 = vadd.f32 %v162, %v165
    %s167 = scalar_lea.vmem [#allocation2], 10
    %168 = vst [vmem:[%s167] sm:$0x3] %v166
    %s169 = sld [smem:[#allocation3 + $0x100]]
    %v170 = vstv %s169
    %v171 = vmul.f32 %v128, %v170
    %s172 = sld [smem:[#allocation3 + $0x101]]
    %v173 = vstv %s172
    %v174 = vmul.f32 %v130, %v173
    %v175 = vadd.f32 %v171, %v174
    %s176 = sld [smem:[#allocation3 + $0x102]]
    %v177 = vstv %s176
    %v178 = vmul.f32 %v132, %v177
    %v179 = vadd.f32 %v175, %v178
    %s180 = sld [smem:[#allocation3 + $0x103]]
    %v181 = vstv %s180
    %v182 = vmul.f32 %v134, %v181
    %v183 = vadd.f32 %v179, %v182
    %s184 = scalar_lea.vmem [#allocation2], 12
    %185 = vst [vmem:[%s184] sm:$0x3] %v183
    %s186 = sld [smem:[#allocation3 + $0x180]]
    %v187 = vstv %s186
    %v188 = vmul.f32 %v128, %v187
    %s189 = sld [smem:[#allocation3 + $0x181]]
    %v190 = vstv %s189
    %v191 = vmul.f32 %v130, %v190
    %v192 = vadd.f32 %v188, %v191
    %s193 = sld [smem:[#allocation3 + $0x182]]
    %v194 = vstv %s193
    %v195 = vmul.f32 %v132, %v194
    %v196 = vadd.f32 %v192, %v195
    %s197 = sld [smem:[#allocation3 + $0x183]]
    %v198 = vstv %s197
    %v199 = vmul.f32 %v134, %v198
    %v200 = vadd.f32 %v196, %v199
    %s201 = scalar_lea.vmem [#allocation2], 14
    %202 = vst [vmem:[%s201] sm:$0x3] %v200
    %v203 = vld [vmem:[#allocation2] sm:$0x3]
    %vm204 = vcmask 1041408
    %v205 = vsel %vm204, %v203, 0.0
    %v206 = vrot.slane %v205, 4
    %v207 = vadd.f32 %v205, %v206
    %v208 = vrot.slane %v207, 2
    %v209 = vadd.f32 %v207, %v208
    %v210 = vrot.slane %v209, 1
    %v211 = vadd.f32 %v209, %v210
    %212 = vadd.xlane.f32.xlu0 %v211
    %v213 = vpop.xlane.xlu0 %212
    %v214 = vadd.f32 %v213, 0.0
    %v215 = vld [vmem:[%s150] sm:$0x3]
    %v216 = vsel %vm204, %v215, 0.0
    %v217 = vrot.slane %v216, 4
    %v218 = vadd.f32 %v216, %v217
    %v219 = vrot.slane %v218, 2
    %v220 = vadd.f32 %v218, %v219
    %v221 = vrot.slane %v220, 1
    %v222 = vadd.f32 %v220, %v221
    %223 = vadd.xlane.f32.xlu0 %v222
    %v224 = vpop.xlane.xlu0 %223
    %v225 = vadd.f32 %v214, %v224
    %v226 = vmul.f32 %v225, 0.001953125
    %v227 = vsub.f32 %v203, %v226
    %v228 = vmul.f32 %v227, %v227
    %v229 = vsel %vm204, %v228, 0.0
    %v230 = vrot.slane %v229, 4
    %v231 = vadd.f32 %v229, %v230
    %v232 = vrot.slane %v231, 2
    %v233 = vadd.f32 %v231, %v232
    %v234 = vrot.slane %v233, 1
    %v235 = vadd.f32 %v233, %v234
    %236 = vadd.xlane.f32.xlu0 %v235
    %v237 = vpop.xlane.xlu0 %236
    %v238 = vadd.f32 %v237, 0.0
    %v239 = vsub.f32 %v215, %v226
    %v240 = vmul.f32 %v239, %v239
    %v241 = vsel %vm204, %v240, 0.0
    %v242 = vrot.slane %v241, 4
    %v243 = vadd.f32 %v241, %v242
    %v244 = vrot.slane %v243, 2
    %v245 = vadd.f32 %v243, %v244
    %v246 = vrot.slane %v245, 1
    %v247 = vadd.f32 %v245, %v246
    %248 = vadd.xlane.f32.xlu0 %v247
    %v249 = vpop.xlane.xlu0 %248
    %v250 = vadd.f32 %v238, %v249
    %v251 = vmul.f32 %v250, 0.001953125
    %s252 = sld [smem:[#allocation5]]
    %v253 = vadd.f32 %v251, 1e-05
    %v254 = vrsqrt.pop %v253
    %v255 = vmul.f32 %v254, %v253
    %v256 = vmul.f32 %v255, %v254
    %v257 = vmul.f32 0.5, %v256
    %v258 = vsub.f32 1.5, %v257
    %v259 = vmul.f32 %v254, %v258
    %vm260 = vweird.f32 %v253
    %vm261 = vweird.f32 %v254
    %vm262 = vmor %vm260, %vm261
    %v263 = vsel %vm262, %v254, %v259
    %v264 = vstv %s252
    %v265 = vmul.f32 %v264, %v263
    %s266 = sld [smem:[#allocation7]]
    %v267 = vmul.f32 %v226, %v265
    %v268 = vstv %s266
    %v269 = vsub.f32 %v268, %v267
    %v270 = vmul.f32 %v203, %v265
    %v271 = vadd.f32 %v270, %v269
    %v272 = vtanh.pop %v271
    %273 = vst [vmem:[%s4] sm:$0x3] %v272
    %v274 = vld [vmem:[%s150] sm:$0x3]
    %v275 = vmul.f32 %v274, %v265
    %v276 = vadd.f32 %v275, %v269
    %v277 = vtanh.pop %v276
    %s278 = scalar_lea.vmem %s4, 8
    %279 = vst [vmem:[%s278] sm:$0x3] %v277
    %v280 = vld [vmem:[%s91] sm:$0x3]
    %v281 = vsel %vm204, %v280, 0.0
    %v282 = vrot.slane %v281, 4
    %v283 = vadd.f32 %v281, %v282
    %v284 = vrot.slane %v283, 2
    %v285 = vadd.f32 %v283, %v284
    %v286 = vrot.slane %v285, 1
    %v287 = vadd.f32 %v285, %v286
    %288 = vadd.xlane.f32.xlu0 %v287
    %v289 = vpop.xlane.xlu0 %288
    %v290 = vadd.f32 %v289, 0.0
    %v291 = vld [vmem:[%s167] sm:$0x3]
    %v292 = vsel %vm204, %v291, 0.0
    %v293 = vrot.slane %v292, 4
    %v294 = vadd.f32 %v292, %v293
    %v295 = vrot.slane %v294, 2
    %v296 = vadd.f32 %v294, %v295
    %v297 = vrot.slane %v296, 1
    %v298 = vadd.f32 %v296, %v297
    %299 = vadd.xlane.f32.xlu0 %v298
    %v300 = vpop.xlane.xlu0 %299
    %v301 = vadd.f32 %v290, %v300
    %v302 = vmul.f32 %v301, 0.001953125
    %v303 = vsub.f32 %v280, %v302
    %v304 = vmul.f32 %v303, %v303
    %v305 = vsel %vm204, %v304, 0.0
    %v306 = vrot.slane %v305, 4
    %v307 = vadd.f32 %v305, %v306
    %v308 = vrot.slane %v307, 2
    %v309 = vadd.f32 %v307, %v308
    %v310 = vrot.slane %v309, 1
    %v311 = vadd.f32 %v309, %v310
    %312 = vadd.xlane.f32.xlu0 %v311
    %v313 = vpop.xlane.xlu0 %312
    %v314 = vadd.f32 %v313, 0.0
    %v315 = vsub.f32 %v291, %v302
    %v316 = vmul.f32 %v315, %v315
    %v317 = vsel %vm204, %v316, 0.0
    %v318 = vrot.slane %v317, 4
    %v319 = vadd.f32 %v317, %v318
    %v320 = vrot.slane %v319, 2
    %v321 = vadd.f32 %v319, %v320
    %v322 = vrot.slane %v321, 1
    %v323 = vadd.f32 %v321, %v322
    %324 = vadd.xlane.f32.xlu0 %v323
    %v325 = vpop.xlane.xlu0 %324
    %v326 = vadd.f32 %v314, %v325
    %v327 = vmul.f32 %v326, 0.001953125
    %s328 = sld [smem:[#allocation5 + $0x1]]
    %v329 = vadd.f32 %v327, 1e-05
    %v330 = vrsqrt.pop %v329
    %v331 = vmul.f32 %v330, %v329
    %v332 = vmul.f32 %v331, %v330
    %v333 = vmul.f32 0.5, %v332
    %v334 = vsub.f32 1.5, %v333
    %v335 = vmul.f32 %v330, %v334
    %vm336 = vweird.f32 %v329
    %vm337 = vweird.f32 %v330
    %vm338 = vmor %vm336, %vm337
    %v339 = vsel %vm338, %v330, %v335
    %v340 = vstv %s328
    %v341 = vmul.f32 %v340, %v339
    %s342 = sld [smem:[#allocation7 + $0x1]]
    %v343 = vmul.f32 %v302, %v341
    %v344 = vstv %s342
    %v345 = vsub.f32 %v344, %v343
    %v346 = vmul.f32 %v280, %v341
    %v347 = vadd.f32 %v346, %v345
    %v348 = vtanh.pop %v347
    %s349 = scalar_lea.vmem %s4, 2
    %350 = vst [vmem:[%s349] sm:$0x3] %v348
    %v351 = vld [vmem:[%s167] sm:$0x3]
    %v352 = vmul.f32 %v351, %v341
    %v353 = vadd.f32 %v352, %v345
    %v354 = vtanh.pop %v353
    %s355 = scalar_lea.vmem %s4, 10
    %356 = vst [vmem:[%s355] sm:$0x3] %v354
    %v357 = vld [vmem:[%s108] sm:$0x3]
    %v358 = vsel %vm204, %v357, 0.0
    %v359 = vrot.slane %v358, 4
    %v360 = vadd.f32 %v358, %v359
    %v361 = vrot.slane %v360, 2
    %v362 = vadd.f32 %v360, %v361
    %v363 = vrot.slane %v362, 1
    %v364 = vadd.f32 %v362, %v363
    %365 = vadd.xlane.f32.xlu0 %v364
    %v366 = vpop.xlane.xlu0 %365
    %v367 = vadd.f32 %v366, 0.0
    %v368 = vld [vmem:[%s184] sm:$0x3]
    %v369 = vsel %vm204, %v368, 0.0
    %v370 = vrot.slane %v369, 4
    %v371 = vadd.f32 %v369, %v370
    %v372 = vrot.slane %v371, 2
    %v373 = vadd.f32 %v371, %v372
    %v374 = vrot.slane %v373, 1
    %v375 = vadd.f32 %v373, %v374
    %376 = vadd.xlane.f32.xlu0 %v375
    %v377 = vpop.xlane.xlu0 %376
    %v378 = vadd.f32 %v367, %v377
    %v379 = vmul.f32 %v378, 0.001953125
    %v380 = vsub.f32 %v357, %v379
    %v381 = vmul.f32 %v380, %v380
    %v382 = vsel %vm204, %v381, 0.0
    %v383 = vrot.slane %v382, 4
    %v384 = vadd.f32 %v382, %v383
    %v385 = vrot.slane %v384, 2
    %v386 = vadd.f32 %v384, %v385
    %v387 = vrot.slane %v386, 1
    %v388 = vadd.f32 %v386, %v387
    %389 = vadd.xlane.f32.xlu0 %v388
    %v390 = vpop.xlane.xlu0 %389
    %v391 = vadd.f32 %v390, 0.0
    %v392 = vsub.f32 %v368, %v379
    %v393 = vmul.f32 %v392, %v392
    %v394 = vsel %vm204, %v393, 0.0
    %v395 = vrot.slane %v394, 4
    %v396 = vadd.f32 %v394, %v395
    %v397 = vrot.slane %v396, 2
    %v398 = vadd.f32 %v396, %v397
    %v399 = vrot.slane %v398, 1
    %v400 = vadd.f32 %v398, %v399
    %401 = vadd.xlane.f32.xlu0 %v400
    %v402 = vpop.xlane.xlu0 %401
    %v403 = vadd.f32 %v391, %v402
    %v404 = vmul.f32 %v403, 0.001953125
    %s405 = sld [smem:[#allocation5 + $0x2]]
    %v406 = vadd.f32 %v404, 1e-05
    %v407 = vrsqrt.pop %v406
    %v408 = vmul.f32 %v407, %v406
    %v409 = vmul.f32 %v408, %v407
    %v410 = vmul.f32 0.5, %v409
    %v411 = vsub.f32 1.5, %v410
    %v412 = vmul.f32 %v407, %v411
    %vm413 = vweird.f32 %v406
    %vm414 = vweird.f32 %v407
    %vm415 = vmor %vm413, %vm414
    %v416 = vsel %vm415, %v407, %v412
    %v417 = vstv %s405
    %v418 = vmul.f32 %v417, %v416
    %s419 = sld [smem:[#allocation7 + $0x2]]
    %v420 = vmul.f32 %v379, %v418
    %v421 = vstv %s419
    %v422 = vsub.f32 %v421, %v420
    %v423 = vmul.f32 %v357, %v418
    %v424 = vadd.f32 %v423, %v422
    %v425 = vtanh.pop %v424
    %s426 = scalar_lea.vmem %s4, 4
    %427 = vst [vmem:[%s426] sm:$0x3] %v425
    %v428 = vld [vmem:[%s184] sm:$0x3]
    %v429 = vmul.f32 %v428, %v418
    %v430 = vadd.f32 %v429, %v422
    %v431 = vtanh.pop %v430
    %s432 = scalar_lea.vmem %s4, 12
    %433 = vst [vmem:[%s432] sm:$0x3] %v431
    %v434 = vld [vmem:[%s125] sm:$0x3]
    %v435 = vsel %vm204, %v434, 0.0
    %v436 = vrot.slane %v435, 4
    %v437 = vadd.f32 %v435, %v436
    %v438 = vrot.slane %v437, 2
    %v439 = vadd.f32 %v437, %v438
    %v440 = vrot.slane %v439, 1
    %v441 = vadd.f32 %v439, %v440
    %442 = vadd.xlane.f32.xlu0 %v441
    %v443 = vpop.xlane.xlu0 %442
    %v444 = vadd.f32 %v443, 0.0
    %v445 = vld [vmem:[%s201] sm:$0x3]
    %v446 = vsel %vm204, %v445, 0.0
    %v447 = vrot.slane %v446, 4
    %v448 = vadd.f32 %v446, %v447
    %v449 = vrot.slane %v448, 2
    %v450 = vadd.f32 %v448, %v449
    %v451 = vrot.slane %v450, 1
    %v452 = vadd.f32 %v450, %v451
    %453 = vadd.xlane.f32.xlu0 %v452
    %v454 = vpop.xlane.xlu0 %453
    %v455 = vadd.f32 %v444, %v454
    %v456 = vmul.f32 %v455, 0.001953125
    %v457 = vsub.f32 %v434, %v456
    %v458 = vmul.f32 %v457, %v457
    %v459 = vsel %vm204, %v458, 0.0
    %v460 = vrot.slane %v459, 4
    %v461 = vadd.f32 %v459, %v460
    %v462 = vrot.slane %v461, 2
    %v463 = vadd.f32 %v461, %v462
    %v464 = vrot.slane %v463, 1
    %v465 = vadd.f32 %v463, %v464
    %466 = vadd.xlane.f32.xlu0 %v465
    %v467 = vpop.xlane.xlu0 %466
    %v468 = vadd.f32 %v467, 0.0
    %v469 = vsub.f32 %v445, %v456
    %v470 = vmul.f32 %v469, %v469
    %v471 = vsel %vm204, %v470, 0.0
    %v472 = vrot.slane %v471, 4
    %v473 = vadd.f32 %v471, %v472
    %v474 = vrot.slane %v473, 2
    %v475 = vadd.f32 %v473, %v474
    %v476 = vrot.slane %v475, 1
    %v477 = vadd.f32 %v475, %v476
    %478 = vadd.xlane.f32.xlu0 %v477
    %v479 = vpop.xlane.xlu0 %478
    %v480 = vadd.f32 %v468, %v479
    %v481 = vmul.f32 %v480, 0.001953125
    %s482 = sld [smem:[#allocation5 + $0x3]]
    %v483 = vadd.f32 %v481, 1e-05
    %v484 = vrsqrt.pop %v483
    %v485 = vmul.f32 %v484, %v483
    %v486 = vmul.f32 %v485, %v484
    %v487 = vmul.f32 0.5, %v486
    %v488 = vsub.f32 1.5, %v487
    %v489 = vmul.f32 %v484, %v488
    %vm490 = vweird.f32 %v483
    %vm491 = vweird.f32 %v484
    %vm492 = vmor %vm490, %vm491
    %v493 = vsel %vm492, %v484, %v489
    %v494 = vstv %s482
    %v495 = vmul.f32 %v494, %v493
    %s496 = sld [smem:[#allocation7 + $0x3]]
    %v497 = vmul.f32 %v456, %v495
    %v498 = vstv %s496
    %v499 = vsub.f32 %v498, %v497
    %v500 = vmul.f32 %v434, %v495
    %v501 = vadd.f32 %v500, %v499
    %v502 = vtanh.pop %v501
    %s503 = scalar_lea.vmem %s4, 6
    %504 = vst [vmem:[%s503] sm:$0x3] %v502
    %v505 = vld [vmem:[%s201] sm:$0x3]
    %v506 = vmul.f32 %v505, %v495
    %v507 = vadd.f32 %v506, %v499
    %v508 = vtanh.pop %v507
    %s509 = scalar_lea.vmem %s4, 14
    %510 = vst [vmem:[%s509] sm:$0x3] %v508
    // Predicated region
    $region30: #{pde_function.1} parent=1 // pred_check
      _
    $region31: #{pde_function.1} parent=1 // pred_check_branch
      %512 = sbr.rel (0) target = $region33
    $region32: #{pde_function.1} parent=1 // pred_region
      _
    $region33: #{pde_function.1} parent=1 // pred_fallthru
      _
    // Predicated region
    $region34: #{pde_function.1} parent=1 // pred_check
      _
    $region35: #{pde_function.1} parent=1 // pred_check_branch
      %514 = sbr.rel (0) target = $region37
    $region36: #{pde_function.1} parent=1 // pred_region
      _
    $region37: #{pde_function.1} parent=1 // pred_fallthru
      _
    %515 = vsyncpa [#allocation4], 1
    %516 = vsyncpa [#allocation6], 1

</llo_original>
